<compile_context>
chip_gen: v7x
topology: tpu7x:2x2x1
jax: 0.10.0
libtpu: 0.0.40
codegen_flags: <defaults>
</compile_context>

<pallas_src>
import functools

import jax
import jax.numpy as jnp
from jax.experimental import pallas as pl
from jax.experimental.pallas import tpu as pltpu

KD, KH, KW = 3, 3, 3  # 3x3x3 conv, padding=(1,1,1), stride=1, no bias


def _conv3d_kernel(x_ref, w_ref, o_ref, *, ts):
    """One (batch, s-tile) grid step.

    x_ref : [S+2, H+2, LANE]   pre-padded input, (w_padded, c_in) folded on
                               the lane axis (bf16)
    w_ref : [9*LANE, W*Cout]   banded weight, kw taps folded in (bf16)
    o_ref : [ts, H, W*Cout]    lane-dense f32 output tile
    """
    H = o_ref.shape[1]
    n_out = o_ref.shape[2]
    lane = x_ref.shape[2]
    s0 = pl.program_id(1) * ts          # first output frame of this tile

    acc = jnp.zeros((ts * H, n_out), jnp.float32)
    for kd in range(KD):
        for kh in range(KH):
            tap = kd * KH + kh
            # Shifts are along the leading/sublane axes only; the lane axis
            # stays fully aligned (whole 128-lane vregs, no masked accesses).
            slab = x_ref[pl.ds(s0 + kd, ts), kh:kh + H, :].reshape(ts * H, lane)
            acc = acc + jnp.dot(
                slab, w_ref[tap * lane:(tap + 1) * lane, :],
                preferred_element_type=jnp.float32)
    o_ref[...] = acc.reshape(ts, H, n_out).astype(o_ref.dtype)


def _banded_weight(weight, w, lane):
    """Fold the kw taps of an OIDHW 3x3x3 conv weight into a banded matmul
    weight of shape [9*lane, w*c_out].

    Row ((kd*3 + kh)*lane + wp*c_in + ci) -> column (q*c_out + co) holds
    weight[co, ci, kd, kh, wp - q] iff 0 <= wp - q <= 2, else 0, where wp is
    the *padded* w coordinate (0..w+1).
    """
    cout, cin = weight.shape[0], weight.shape[1]
    wp = w + 2
    w_dhkio = jnp.transpose(weight, (2, 3, 4, 1, 0))        # [kd,kh,kw,ci,co]
    band = (jnp.arange(wp)[None, :, None] ==
            (jnp.arange(w)[None, None, :] + jnp.arange(KW)[:, None, None]))
    band = band.astype(weight.dtype)                        # [kw, wp, w]
    w_big = jnp.einsum('kpq,dhkio->dhpiqo', band, w_dhkio)  # [3,3,wp,ci,w,co]
    w_big = w_big.reshape(KD * KH, wp * cin, w * cout)
    w_big = jnp.pad(w_big, ((0, 0), (0, lane - wp * cin), (0, 0)))
    return w_big.reshape(KD * KH * lane, w * cout)


def _pick_s_tile(s):
    """Largest tile <= 8 frames that divides s and yields >= 2 tiles."""
    for cand in (8, 7, 6, 5, 4, 3, 2):
        if s % cand == 0 and s // cand >= 2:
            return cand
    return s


def basic_conv3d_forward(x, weight):
    """BasicConv3d.forward.

    x:      [n, c_in, s, h, w]
    weight: [c_out, c_in, 3, 3, 3]  (PyTorch OIDHW layout, bias-free)
    returns [n, c_out, s, h, w]  (float32)
    """
    n, cin, s, h, w = x.shape
    cout = weight.shape[0]
    lane = ((w + 2) * cin + 127) // 128 * 128   # lane-pad (w+2)*c_in to 128
    ts = _pick_s_tile(s)

    # Channels-last with (w, c_in) folded onto the lane axis; all conv halos
    # (d, h, w) and the lane tail are zero-padded here, fused by XLA into the
    # transpose/cast pass that already rewrites every byte.
    # TODO(synk): for stacked BasicConv3d layers, keep activations in this
    # padded folded-NDHWC layout between layers instead of transposing per call.
    x_cl = jnp.transpose(x, (0, 2, 3, 4, 1)).reshape(n, s, h, w * cin)
    x_pad = jnp.pad(x_cl.astype(jnp.bfloat16),
                    ((0, 0), (1, 1), (1, 1), (cin, lane - (w + 1) * cin)))
    w_big = _banded_weight(weight, w, lane).astype(jnp.bfloat16)

    out = pl.pallas_call(
        functools.partial(_conv3d_kernel, ts=ts),
        out_shape=jax.ShapeDtypeStruct((n, s, h, w * cout), jnp.float32),
        grid_spec=pltpu.PrefetchScalarGridSpec(
            num_scalar_prefetch=0,
            grid=(n, s // ts),
            in_specs=[
                # Whole padded batch element; the block index is constant
                # along the s-tile axis, so it is fetched once per element.
                pl.BlockSpec((None, s + 2, h + 2, lane),
                             lambda b, i: (b, 0, 0, 0)),
                # Grid-invariant banded weight (tiny at these shapes).
                pl.BlockSpec((KD * KH * lane, w * cout),
                             lambda b, i: (0, 0)),
            ],
            out_specs=pl.BlockSpec((None, ts, h, w * cout),
                                   lambda b, i: (b, i, 0, 0)),
        ),
        compiler_params=pltpu.CompilerParams(
            dimension_semantics=("parallel", "parallel"),
        ),
    )(x_pad, w_big)

    out = out.reshape(n, s, h, w, cout)          # free: same row-major bytes
    return jnp.transpose(out, (0, 4, 1, 2, 3))   # [n, c_out, s, h, w]


if __name__ == "__main__":
    # Small, module-consistent shapes: n=2, c_in=4, s=8, h=w=16, c_out=8.
    n, c_in, s, h, w = 2, 4, 8, 16, 16
    c_out = 8

    key = jax.random.PRNGKey(0)
    kx, kw_ = jax.random.split(key)
    x = jax.random.normal(kx, (n, c_in, s, h, w), dtype=jnp.float32)
    weight = 0.05 * jax.random.normal(
        kw_, (c_out, c_in, KD, KH, KW), dtype=jnp.float32)

    fwd = jax.jit(basic_conv3d_forward)
    out = jax.block_until_ready(fwd(x, weight))
    assert out.shape == (n, c_out, s, h, w), out.shape

    dn = ("NCDHW", "OIDHW", "NCDHW")

    # Reference A: f32 conv over bf16-rounded operands (the same quantization
    # the kernel's bf16 MXU path sees; bf16*bf16 products are exact in f32, so
    # only accumulation order differs).  Tight tolerance.
    xq = x.astype(jnp.bfloat16).astype(jnp.float32)
    wq = weight.astype(jnp.bfloat16).astype(jnp.float32)
    ref_q = jax.lax.conv_general_dilated(
        xq, wq, window_strides=(1, 1, 1), padding="SAME",
        dimension_numbers=dn)
    err_q = float(jnp.max(jnp.abs(out - ref_q)))
    assert jnp.allclose(out, ref_q, atol=1e-3, rtol=1e-3), err_q

    # Reference B: exact f32 nn.Conv3d semantics; looser tolerance only covers
    # the bf16 rounding of the MXU operands (effective K per output is 108).
    ref = jax.lax.conv_general_dilated(
        x, weight, window_strides=(1, 1, 1), padding="SAME",
        dimension_numbers=dn)
    err = float(jnp.max(jnp.abs(out - ref)))
    assert jnp.allclose(out, ref, atol=3e-2, rtol=3e-2), err

    print("KERNEL_OK")
</pallas_src>

<mosaic_0001>
module attributes {stable_mosaic.version = 11 : i64} {
  func.func @_conv3d_kernel(%arg0: i32, %arg1: i32, %arg2: memref<1x10x18x128xbf16, #tpu.memory_space<vmem>>, %arg3: memref<1152x128xbf16, #tpu.memory_space<vmem>>, %arg4: memref<1x4x16x128xf32, #tpu.memory_space<vmem>>) attributes {dimension_semantics = [#tpu.dimension_semantics<parallel>, #tpu.dimension_semantics<parallel>], iteration_bounds = array<i64: 2, 2>, scalar_prefetch = 0 : i64, scratch_operands = 0 : i64, tpu.core_type = #tpu.core_type<tc>, window_params = [{transform_indices = @transform_0, window_bounds = array<i64: 1, 10, 18, 128>}, {pipeline_mode = #tpu.pipeline_mode<synchronous>, transform_indices = @transform_1, window_bounds = array<i64: 1152, 128>}, {transform_indices = @transform_2, window_bounds = array<i64: 1, 4, 16, 128>}]} {
    %c4_i32 = arith.constant 4 : i32
    %0 = arith.muli %arg1, %c4_i32 : i32
    %cst = arith.constant 0.000000e+00 : f32
    %1 = vector.broadcast %cst : f32 to vector<64x128xf32>
    %c0_i32 = arith.constant 0 : i32
    %2 = arith.addi %0, %c0_i32 : i32
    %c0 = arith.constant 0 : index
    %3 = arith.index_cast %2 : i32 to index
    %c0_0 = arith.constant 0 : index
    %c0_1 = arith.constant 0 : index
    %4 = vector.load %arg2[%c0, %3, %c0_0, %c0_1] : memref<1x10x18x128xbf16, #tpu.memory_space<vmem>>, vector<1x4x16x128xbf16>
    %5 = vector.shape_cast %4 : vector<1x4x16x128xbf16> to vector<4x16x128xbf16>
    %6 = vector.shape_cast %5 : vector<4x16x128xbf16> to vector<64x128xbf16>
    %c0_2 = arith.constant 0 : index
    %c0_3 = arith.constant 0 : index
    %7 = vector.load %arg3[%c0_2, %c0_3] : memref<1152x128xbf16, #tpu.memory_space<vmem>>, vector<128x128xbf16>
    %cst_4 = arith.constant dense<0.000000e+00> : vector<64x128xf32>
    %8 = tpu.matmul %6, %7, %cst_4 {dimension_numbers = #tpu.dot_dimension_numbers<[1], [0], [0], [1], [0, 0, 1, 1], [], []>} : vector<64x128xbf16>, vector<128x128xbf16>, vector<64x128xf32> -> vector<64x128xf32>
    %9 = arith.addf %1, %8 : vector<64x128xf32>
    %c0_i32_5 = arith.constant 0 : i32
    %10 = arith.addi %0, %c0_i32_5 : i32
    %c0_6 = arith.constant 0 : index
    %11 = arith.index_cast %10 : i32 to index
    %c1 = arith.constant 1 : index
    %c0_7 = arith.constant 0 : index
    %12 = vector.load %arg2[%c0_6, %11, %c1, %c0_7] : memref<1x10x18x128xbf16, #tpu.memory_space<vmem>>, vector<1x4x16x128xbf16>
    %13 = vector.shape_cast %12 : vector<1x4x16x128xbf16> to vector<4x16x128xbf16>
    %14 = vector.shape_cast %13 : vector<4x16x128xbf16> to vector<64x128xbf16>
    %c128 = arith.constant 128 : index
    %c0_8 = arith.constant 0 : index
    %15 = vector.load %arg3[%c128, %c0_8] : memref<1152x128xbf16, #tpu.memory_space<vmem>>, vector<128x128xbf16>
    %cst_9 = arith.constant dense<0.000000e+00> : vector<64x128xf32>
    %16 = tpu.matmul %14, %15, %cst_9 {dimension_numbers = #tpu.dot_dimension_numbers<[1], [0], [0], [1], [0, 0, 1, 1], [], []>} : vector<64x128xbf16>, vector<128x128xbf16>, vector<64x128xf32> -> vector<64x128xf32>
    %17 = arith.addf %9, %16 : vector<64x128xf32>
    %c0_i32_10 = arith.constant 0 : i32
    %18 = arith.addi %0, %c0_i32_10 : i32
    %c0_11 = arith.constant 0 : index
    %19 = arith.index_cast %18 : i32 to index
    %c2 = arith.constant 2 : index
    %c0_12 = arith.constant 0 : index
    %20 = vector.load %arg2[%c0_11, %19, %c2, %c0_12] : memref<1x10x18x128xbf16, #tpu.memory_space<vmem>>, vector<1x4x16x128xbf16>
    %21 = vector.shape_cast %20 : vector<1x4x16x128xbf16> to vector<4x16x128xbf16>
    %22 = vector.shape_cast %21 : vector<4x16x128xbf16> to vector<64x128xbf16>
    %c256 = arith.constant 256 : index
    %c0_13 = arith.constant 0 : index
    %23 = vector.load %arg3[%c256, %c0_13] : memref<1152x128xbf16, #tpu.memory_space<vmem>>, vector<128x128xbf16>
    %cst_14 = arith.constant dense<0.000000e+00> : vector<64x128xf32>
    %24 = tpu.matmul %22, %23, %cst_14 {dimension_numbers = #tpu.dot_dimension_numbers<[1], [0], [0], [1], [0, 0, 1, 1], [], []>} : vector<64x128xbf16>, vector<128x128xbf16>, vector<64x128xf32> -> vector<64x128xf32>
    %25 = arith.addf %17, %24 : vector<64x128xf32>
    %c1_i32 = arith.constant 1 : i32
    %26 = arith.addi %0, %c1_i32 : i32
    %c0_15 = arith.constant 0 : index
    %27 = arith.index_cast %26 : i32 to index
    %c0_16 = arith.constant 0 : index
    %c0_17 = arith.constant 0 : index
    %28 = vector.load %arg2[%c0_15, %27, %c0_16, %c0_17] : memref<1x10x18x128xbf16, #tpu.memory_space<vmem>>, vector<1x4x16x128xbf16>
    %29 = vector.shape_cast %28 : vector<1x4x16x128xbf16> to vector<4x16x128xbf16>
    %30 = vector.shape_cast %29 : vector<4x16x128xbf16> to vector<64x128xbf16>
    %c384 = arith.constant 384 : index
    %c0_18 = arith.constant 0 : index
    %31 = vector.load %arg3[%c384, %c0_18] : memref<1152x128xbf16, #tpu.memory_space<vmem>>, vector<128x128xbf16>
    %cst_19 = arith.constant dense<0.000000e+00> : vector<64x128xf32>
    %32 = tpu.matmul %30, %31, %cst_19 {dimension_numbers = #tpu.dot_dimension_numbers<[1], [0], [0], [1], [0, 0, 1, 1], [], []>} : vector<64x128xbf16>, vector<128x128xbf16>, vector<64x128xf32> -> vector<64x128xf32>
    %33 = arith.addf %25, %32 : vector<64x128xf32>
    %c1_i32_20 = arith.constant 1 : i32
    %34 = arith.addi %0, %c1_i32_20 : i32
    %c0_21 = arith.constant 0 : index
    %35 = arith.index_cast %34 : i32 to index
    %c1_22 = arith.constant 1 : index
    %c0_23 = arith.constant 0 : index
    %36 = vector.load %arg2[%c0_21, %35, %c1_22, %c0_23] : memref<1x10x18x128xbf16, #tpu.memory_space<vmem>>, vector<1x4x16x128xbf16>
    %37 = vector.shape_cast %36 : vector<1x4x16x128xbf16> to vector<4x16x128xbf16>
    %38 = vector.shape_cast %37 : vector<4x16x128xbf16> to vector<64x128xbf16>
    %c512 = arith.constant 512 : index
    %c0_24 = arith.constant 0 : index
    %39 = vector.load %arg3[%c512, %c0_24] : memref<1152x128xbf16, #tpu.memory_space<vmem>>, vector<128x128xbf16>
    %cst_25 = arith.constant dense<0.000000e+00> : vector<64x128xf32>
    %40 = tpu.matmul %38, %39, %cst_25 {dimension_numbers = #tpu.dot_dimension_numbers<[1], [0], [0], [1], [0, 0, 1, 1], [], []>} : vector<64x128xbf16>, vector<128x128xbf16>, vector<64x128xf32> -> vector<64x128xf32>
    %41 = arith.addf %33, %40 : vector<64x128xf32>
    %c1_i32_26 = arith.constant 1 : i32
    %42 = arith.addi %0, %c1_i32_26 : i32
    %c0_27 = arith.constant 0 : index
    %43 = arith.index_cast %42 : i32 to index
    %c2_28 = arith.constant 2 : index
    %c0_29 = arith.constant 0 : index
    %44 = vector.load %arg2[%c0_27, %43, %c2_28, %c0_29] : memref<1x10x18x128xbf16, #tpu.memory_space<vmem>>, vector<1x4x16x128xbf16>
    %45 = vector.shape_cast %44 : vector<1x4x16x128xbf16> to vector<4x16x128xbf16>
    %46 = vector.shape_cast %45 : vector<4x16x128xbf16> to vector<64x128xbf16>
    %c640 = arith.constant 640 : index
    %c0_30 = arith.constant 0 : index
    %47 = vector.load %arg3[%c640, %c0_30] : memref<1152x128xbf16, #tpu.memory_space<vmem>>, vector<128x128xbf16>
    %cst_31 = arith.constant dense<0.000000e+00> : vector<64x128xf32>
    %48 = tpu.matmul %46, %47, %cst_31 {dimension_numbers = #tpu.dot_dimension_numbers<[1], [0], [0], [1], [0, 0, 1, 1], [], []>} : vector<64x128xbf16>, vector<128x128xbf16>, vector<64x128xf32> -> vector<64x128xf32>
    %49 = arith.addf %41, %48 : vector<64x128xf32>
    %c2_i32 = arith.constant 2 : i32
    %50 = arith.addi %0, %c2_i32 : i32
    %c0_32 = arith.constant 0 : index
    %51 = arith.index_cast %50 : i32 to index
    %c0_33 = arith.constant 0 : index
    %c0_34 = arith.constant 0 : index
    %52 = vector.load %arg2[%c0_32, %51, %c0_33, %c0_34] : memref<1x10x18x128xbf16, #tpu.memory_space<vmem>>, vector<1x4x16x128xbf16>
    %53 = vector.shape_cast %52 : vector<1x4x16x128xbf16> to vector<4x16x128xbf16>
    %54 = vector.shape_cast %53 : vector<4x16x128xbf16> to vector<64x128xbf16>
    %c768 = arith.constant 768 : index
    %c0_35 = arith.constant 0 : index
    %55 = vector.load %arg3[%c768, %c0_35] : memref<1152x128xbf16, #tpu.memory_space<vmem>>, vector<128x128xbf16>
    %cst_36 = arith.constant dense<0.000000e+00> : vector<64x128xf32>
    %56 = tpu.matmul %54, %55, %cst_36 {dimension_numbers = #tpu.dot_dimension_numbers<[1], [0], [0], [1], [0, 0, 1, 1], [], []>} : vector<64x128xbf16>, vector<128x128xbf16>, vector<64x128xf32> -> vector<64x128xf32>
    %57 = arith.addf %49, %56 : vector<64x128xf32>
    %c2_i32_37 = arith.constant 2 : i32
    %58 = arith.addi %0, %c2_i32_37 : i32
    %c0_38 = arith.constant 0 : index
    %59 = arith.index_cast %58 : i32 to index
    %c1_39 = arith.constant 1 : index
    %c0_40 = arith.constant 0 : index
    %60 = vector.load %arg2[%c0_38, %59, %c1_39, %c0_40] : memref<1x10x18x128xbf16, #tpu.memory_space<vmem>>, vector<1x4x16x128xbf16>
    %61 = vector.shape_cast %60 : vector<1x4x16x128xbf16> to vector<4x16x128xbf16>
    %62 = vector.shape_cast %61 : vector<4x16x128xbf16> to vector<64x128xbf16>
    %c896 = arith.constant 896 : index
    %c0_41 = arith.constant 0 : index
    %63 = vector.load %arg3[%c896, %c0_41] : memref<1152x128xbf16, #tpu.memory_space<vmem>>, vector<128x128xbf16>
    %cst_42 = arith.constant dense<0.000000e+00> : vector<64x128xf32>
    %64 = tpu.matmul %62, %63, %cst_42 {dimension_numbers = #tpu.dot_dimension_numbers<[1], [0], [0], [1], [0, 0, 1, 1], [], []>} : vector<64x128xbf16>, vector<128x128xbf16>, vector<64x128xf32> -> vector<64x128xf32>
    %65 = arith.addf %57, %64 : vector<64x128xf32>
    %c2_i32_43 = arith.constant 2 : i32
    %66 = arith.addi %0, %c2_i32_43 : i32
    %c0_44 = arith.constant 0 : index
    %67 = arith.index_cast %66 : i32 to index
    %c2_45 = arith.constant 2 : index
    %c0_46 = arith.constant 0 : index
    %68 = vector.load %arg2[%c0_44, %67, %c2_45, %c0_46] : memref<1x10x18x128xbf16, #tpu.memory_space<vmem>>, vector<1x4x16x128xbf16>
    %69 = vector.shape_cast %68 : vector<1x4x16x128xbf16> to vector<4x16x128xbf16>
    %70 = vector.shape_cast %69 : vector<4x16x128xbf16> to vector<64x128xbf16>
    %c1024 = arith.constant 1024 : index
    %c0_47 = arith.constant 0 : index
    %71 = vector.load %arg3[%c1024, %c0_47] : memref<1152x128xbf16, #tpu.memory_space<vmem>>, vector<128x128xbf16>
    %cst_48 = arith.constant dense<0.000000e+00> : vector<64x128xf32>
    %72 = tpu.matmul %70, %71, %cst_48 {dimension_numbers = #tpu.dot_dimension_numbers<[1], [0], [0], [1], [0, 0, 1, 1], [], []>} : vector<64x128xbf16>, vector<128x128xbf16>, vector<64x128xf32> -> vector<64x128xf32>
    %73 = arith.addf %65, %72 : vector<64x128xf32>
    %74 = vector.shape_cast %73 : vector<64x128xf32> to vector<4x16x128xf32>
    %c0_49 = arith.constant 0 : index
    %c0_50 = arith.constant 0 : index
    %c0_51 = arith.constant 0 : index
    %c0_52 = arith.constant 0 : index
    %75 = vector.load %arg4[%c0_49, %c0_50, %c0_51, %c0_52] : memref<1x4x16x128xf32, #tpu.memory_space<vmem>>, vector<1x4x16x128xf32>
    %76 = vector.shape_cast %75 : vector<1x4x16x128xf32> to vector<4x16x128xf32>
    %77 = vector.shape_cast %74 : vector<4x16x128xf32> to vector<1x4x16x128xf32>
    tpu.vector_store %arg4[%c0_49, %c0_50, %c0_51, %c0_52], %77 {strides = array<i32>} : memref<1x4x16x128xf32, #tpu.memory_space<vmem>>, vector<1x4x16x128xf32>,
    return
  }
  func.func @transform_0(%arg0: i32, %arg1: i32) -> (i32, i32, i32, i32) {
    %c0_i32 = arith.constant 0 : i32
    %c0_i32_0 = arith.constant 0 : i32
    %c0_i32_1 = arith.constant 0 : i32
    %c0_i32_2 = arith.constant 0 : i32
    return %arg0, %c0_i32, %c0_i32_0, %c0_i32_1 : i32, i32, i32, i32
  }
  func.func @transform_1(%arg0: i32, %arg1: i32) -> (i32, i32) {
    %c0_i32 = arith.constant 0 : i32
    %c0_i32_0 = arith.constant 0 : i32
    %c0_i32_1 = arith.constant 0 : i32
    return %c0_i32, %c0_i32_0 : i32, i32
  }
  func.func @transform_2(%arg0: i32, %arg1: i32) -> (i32, i32, i32, i32) {
    %c0_i32 = arith.constant 0 : i32
    %c0_i32_0 = arith.constant 0 : i32
    %c0_i32_1 = arith.constant 0 : i32
    return %arg0, %arg1, %c0_i32, %c0_i32_0 : i32, i32, i32, i32
  }
}

</mosaic_0001>

<llo_original>
// kernel: basic_conv3d_forward.1
$region0: #{basic_conv3d_forward.1}
  #allocation0 [shape = 'u32[]', space=smem, size = 0x4, offset = 0x4, fixed_abs, tag = 'smem constant byte address 0x4 - core index']
  #allocation1 [shape = 'u32[144,128]{1,0:T(1,128)}', space=vmem, size = 0x12000, scoped, tag = 'internal scratch']
  %s0 = inlined_call_operand.vmem [shape: bf16[2,10,18,128], index: 0, kind: input, shape index: {}]
  %s1 = inlined_call_operand.vmem [shape: bf16[1152,128], index: 1, kind: input, shape index: {}]
  %s2 = inlined_call_operand.vmem [shape: f32[2,8,16,128], index: 2, kind: output, shape index: {}]
  %s3 = sld [smem:[#allocation0]]
  $region41: #{basic_conv3d_forward.1} parent=0
    _
  %s5 = ssub.s32 1, %s3
  %s6 = scalar_select 0, %s5, %s3
  loop: start=0, step=1, limit=6
  $region2: #{basic_conv3d_forward.1} parent=0 // loop_pre_header
    _
  $region3: #{basic_conv3d_forward.1} parent=0 // loop_header
    %s8 = sphi 0, %s12
    %p9 = scmp.ge.s32.totalorder %s8, 6
    %s15 = sphi 0, %s27
    %s16 = sphi 0, %s23
    %s17 = sphi 0, %s15
    %s18 = sphi 0, %s16
    %s19 = sphi 0, %s17
    %s20 = sphi 0, %s18
    %s30 = sphi 0, %s32
    %s33 = sphi 0, %s30
    %s34 = sphi 0, %s33
    %s50 = sphi 0, %s34
    %s54 = sphi 0, %s54
    %s56 = sphi 0, %s54
    %s57 = sphi 0, %s56
    %s71 = sphi 0, %s57
    %s79 = sphi 0, %s81
    %s82 = sphi 0, %s79
    %s83 = sphi 0, %s82
    %s99 = sphi 0, %s83
  $region4: #{basic_conv3d_forward.1} parent=0 // loop_header_branch
    %11 = sbr.rel (%p9) target = $region8
  $region5: #{basic_conv3d_forward.1} parent=0 // loop_body
    %s13 = ssub.s32 %s8, 1
    %s14 = ssub.s32 %s8, 2
    %s21 = sadd.s32 1, %s16
    %p22 = scmp.ge.s32.totalorder %s21, 2
    %s23 = scalar_select %p22, 0, %s21
    %s24 = sadd.s32 1, %s15
    %s25 = scalar_select %p22, %s24, %s15
    %p26 = scmp.ge.s32.totalorder %s25, 2
    %s27 = scalar_select %p26, 0, %s25
    %s28 = ssub.s32 %s15, %s27
    %p29 = scmp.eq.s32.totalorder %s28, 0
    %s31 = sadd.s32 %s30, 1
    %s32 = scalar_select %p29, %s30, %s31
    %p35 = pneg %p29
    %p36 = scmp.eq.s32.totalorder %s8, 3
    %p37 = por %p35, %p36
    %p38 = scmp.ne.s32.totalorder %s30, %s33
    %p39 = scmp.eq.s32.totalorder %s8, 0
    %p40 = por %p38, %p39
    %p41 = scmp.ne.s32.totalorder %s30, %s33
    %p42 = scmp.eq.s32.totalorder %s13, 3
    %p43 = por %p41, %p42
    %p44 = scmp.ne.s32.totalorder %s33, %s34
    %p45 = scmp.eq.s32.totalorder %s13, 0
    %p46 = por %p44, %p45
    %p47 = scmp.ne.s32.totalorder %s33, %s34
    %p48 = scmp.eq.s32.totalorder %s14, 3
    %p49 = por %p47, %p48
    %p51 = scmp.ne.s32.totalorder %s34, %s50
    %p52 = scmp.eq.s32.totalorder %s14, 0
    %p53 = por %p51, %p52
    %s55 = sadd.s32 %s54, 1
    %p58 = scmp.eq.s32.totalorder %s8, 3
    %p59 = scmp.ne.s32.totalorder %s54, %s56
    %p60 = scmp.eq.s32.totalorder %s8, 0
    %p61 = por %p59, %p60
    %p62 = scmp.ne.s32.totalorder %s54, %s56
    %p63 = scmp.eq.s32.totalorder %s13, 3
    %p64 = por %p62, %p63
    %p65 = scmp.ne.s32.totalorder %s56, %s57
    %p66 = scmp.eq.s32.totalorder %s13, 0
    %p67 = por %p65, %p66
    %p68 = scmp.ne.s32.totalorder %s56, %s57
    %p69 = scmp.eq.s32.totalorder %s14, 3
    %p70 = por %p68, %p69
    %p72 = scmp.ne.s32.totalorder %s57, %s71
    %p73 = scmp.eq.s32.totalorder %s14, 0
    %p74 = por %p72, %p73
    %s75 = ssub.s32 %s15, %s27
    %s76 = ssub.s32 %s16, %s23
    %s77 = sor.u32 %s75, %s76
    %p78 = scmp.eq.s32.totalorder %s77, 0
    %s80 = sadd.s32 %s79, 1
    %s81 = scalar_select %p78, %s79, %s80
    %p84 = pneg %p78
    %p85 = scmp.eq.s32.totalorder %s8, 3
    %p86 = por %p84, %p85
    %p87 = scmp.ne.s32.totalorder %s79, %s82
    %p88 = scmp.eq.s32.totalorder %s8, 0
    %p89 = por %p87, %p88
    %p90 = scmp.ne.s32.totalorder %s79, %s82
    %p91 = scmp.eq.s32.totalorder %s13, 3
    %p92 = por %p90, %p91
    %p93 = scmp.ne.s32.totalorder %s82, %s83
    %p94 = scmp.eq.s32.totalorder %s13, 0
    %p95 = por %p93, %p94
    %p96 = scmp.ne.s32.totalorder %s82, %s83
    %p97 = scmp.eq.s32.totalorder %s14, 3
    %p98 = por %p96, %p97
    %p100 = scmp.ne.s32.totalorder %s83, %s99
    %p101 = scmp.eq.s32.totalorder %s14, 0
    %p102 = por %p100, %p101
    %p103 = scmp.le.s32.totalorder 1, %s8
    %p104 = scmp.lt.s32.totalorder %s8, 5
    %p105 = pnand %p103, %p104
    %p106 = pneg %p105
    // Predicated region
    $region9: #{basic_conv3d_forward.1} parent=5 // pred_check
      _
    $region10: #{basic_conv3d_forward.1} parent=5 // pred_check_branch
      %108 = sbr.rel (%p105) target = $region12
    $region11: #{basic_conv3d_forward.1} parent=5 // pred_region
      %s109 = ssub.s32 %s8, 1
      // Predicated region
      $region13: #{basic_conv3d_forward.1} parent=11 // pred_check
        %p110 = pneg %p67
      $region14: #{basic_conv3d_forward.1} parent=11 // pred_check_branch
        %112 = sbr.rel (%p110) target = $region16
      $region15: #{basic_conv3d_forward.1} parent=11 // pred_region
        _
      $region16: #{basic_conv3d_forward.1} parent=11 // pred_fallthru
        _
    $region12: #{basic_conv3d_forward.1} parent=5 // pred_fallthru
      _
    %p113 = scmp.lt.s32.totalorder %s8, 4
    // Predicated region
    $region17: #{basic_conv3d_forward.1} parent=5 // pred_check
      %p114 = pneg %p113
    $region18: #{basic_conv3d_forward.1} parent=5 // pred_check_branch
      %116 = sbr.rel (%p114) target = $region20
    $region19: #{basic_conv3d_forward.1} parent=5 // pred_region
      // Predicated region
      $region21: #{basic_conv3d_forward.1} parent=19 // pred_check
        %p117 = pneg %p40
      $region22: #{basic_conv3d_forward.1} parent=19 // pred_check_branch
        %119 = sbr.rel (%p117) target = $region24
      $region23: #{basic_conv3d_forward.1} parent=19 // pred_region
        %p120 = scmp.lt.s32.totalorder %s15, 1
        %s121 = scalar_select %p120, %s15, 1
        %s122 = smul.addr %s121, 30
        %s123 = smul.addr %s122, 4
        %s124 = scalar_lea.vmem %s0, %s123
      $region24: #{basic_conv3d_forward.1} parent=19 // pred_fallthru
        _
    $region20: #{basic_conv3d_forward.1} parent=5 // pred_fallthru
      _
    %p125 = scmp.le.s32.totalorder 1, %s8
    %p126 = scmp.lt.s32.totalorder %s8, 5
    %p127 = pnand %p125, %p126
    %p128 = pneg %p127
    // Predicated region
    $region25: #{basic_conv3d_forward.1} parent=5 // pred_check
      _
    $region26: #{basic_conv3d_forward.1} parent=5 // pred_check_branch
      %130 = sbr.rel (%p127) target = $region28
    $region27: #{basic_conv3d_forward.1} parent=5 // pred_region
      %s131 = ssub.s32 %s8, 1
      %p132 = scmp.lt.s32.totalorder %s17, 1
      %s133 = scalar_select %p132, %s17, 1
      %s134 = smul.addr %s133, 30
      %s135 = smul.addr %s134, 4
      %s136 = scalar_lea.vmem %s0, %s135
      %p137 = pneg %p46
      %p138 = pneg %p43
      %p139 = pneg %p67
      %p140 = pneg %p64
      %p141 = pneg %p95
      %p142 = pneg %p92
      %s143 = smul.u32 4, %s18
      %p144 = scmp.lt.s32.totalorder %s17, 1
      %s145 = scalar_select %p144, %s17, 1
      %p146 = scmp.lt.s32.totalorder %s143, 7
      %s147 = scalar_select %p146, %s143, 7
      %s148 = smul.addr %s147, 2
      %s149 = smul.addr %s145, 16
      %s150 = sadd.s32 %s148, %s149
      %s151 = smul.addr %s150, 8
      %s152 = scalar_lea.vmem %s2, %s151
      %p153 = scmp.lt.s32.totalorder %s17, 1
      %s154 = scalar_select %p153, %s17, 1
      %s155 = smul.addr %s154, 30
      %s156 = smul.addr %s155, 4
      %s157 = scalar_lea.vmem %s0, %s156
      %s158 = smul.u32 4, %s18
      %p159 = scmp.lt.s32.totalorder %s17, 1
      %s160 = scalar_select %p159, %s17, 1
      %p161 = scmp.lt.s32.totalorder %s158, 7
      %s162 = scalar_select %p161, %s158, 7
      %s163 = smul.addr %s162, 2
      %s164 = smul.addr %s160, 16
      %s165 = sadd.s32 %s163, %s164
      %s166 = smul.addr %s165, 8
      %s167 = scalar_lea.vmem %s2, %s166
      %s168 = smul.u32 4, %s18
      %s170 = smul.u32 %s18, 4
      %s171 = smul.u32 %s170, 3
      %s172 = smul.addr %s171, 4
      %s173 = scalar_lea.vmem %s157, %s172
      %v174 = vld [vmem:[%s173] sm:$0xf]
      %v175 = vld [vmem:[%s173 + $0x4] sm:$0xf]
      %v176 = vld [vmem:[%s173 + $0xc] sm:$0xf]
      %v177 = vld [vmem:[%s173 + $0x10] sm:$0xf]
      %v178 = vld [vmem:[%s173 + $0x18] sm:$0xf]
      %v179 = vld [vmem:[%s173 + $0x1c] sm:$0xf]
      %v180 = vld [vmem:[%s173 + $0x24] sm:$0xf]
      %v181 = vld [vmem:[%s173 + $0x28] sm:$0xf]
      %v182 = vld [vmem:[%s1] sm:$0xf]
      %v183 = vld [vmem:[%s1 + $0x4] sm:$0xf]
      %v184 = vld [vmem:[%s1 + $0x8] sm:$0xf]
      %v185 = vld [vmem:[%s1 + $0xc] sm:$0xf]
      %v186 = vld [vmem:[%s1 + $0x10] sm:$0xf]
      %v187 = vld [vmem:[%s1 + $0x14] sm:$0xf]
      %v188 = vld [vmem:[%s1 + $0x18] sm:$0xf]
      %v189 = vld [vmem:[%s1 + $0x1c] sm:$0xf]
      %v190 = vld [vmem:[%s1 + $0x20] sm:$0xf]
      %v191 = vld [vmem:[%s1 + $0x24] sm:$0xf]
      %v192 = vld [vmem:[%s1 + $0x28] sm:$0xf]
      %v193 = vld [vmem:[%s1 + $0x2c] sm:$0xf]
      %v194 = vld [vmem:[%s1 + $0x30] sm:$0xf]
      %v195 = vld [vmem:[%s1 + $0x34] sm:$0xf]
      %v196 = vld [vmem:[%s1 + $0x38] sm:$0xf]
      %v197 = vld [vmem:[%s1 + $0x3c] sm:$0xf]
      %v198 = vld [vmem:[%s173 + $0x8] sm:$0x1]
      %v199 = vld [vmem:[%s173 + $0x14] sm:$0x1]
      %v200 = vld [vmem:[%s173 + $0x20] sm:$0x1]
      %v201 = vld [vmem:[%s173 + $0x2c] sm:$0x1]
      %vm202 = vsmask.f32 3328
      %vm203 = vsmask.f32 7440
      %vm204 = vmor %vm202, %vm203
      %v206 = vshrl.u32 %v174, 16
      %v208 = vrot.slane %v206, 4
      %v209 = vshll.u32 %v174, 16
      %v211 = vrot.slane %v209, 5
      %v212 = vor.u32 %v208, %v211
      %v213 = vrot.slane %v212, 4
      %v215 = vshll.u32 %v175, 16
      %v217 = vrot.slane %v215, 5
      %v218 = vsel %vm204, %v213, %v217
      %v219 = vshrl.u32 %v175, 16
      %v221 = vrot.slane %v219, 4
      %v222 = vor.u32 %v221, %v217
      %v223 = vrot.slane %v222, 4
      %v225 = vshll.u32 %v198, 16
      %v227 = vrot.slane %v225, 5
      %v228 = vsel %vm204, %v223, %v227
      %v230 = vshrl.u32 %v176, 16
      %v232 = vrot.slane %v230, 4
      %v233 = vshll.u32 %v176, 16
      %v235 = vrot.slane %v233, 5
      %v236 = vor.u32 %v232, %v235
      %v237 = vrot.slane %v236, 4
      %v239 = vshll.u32 %v177, 16
      %v241 = vrot.slane %v239, 5
      %v242 = vsel %vm204, %v237, %v241
      %v243 = vshrl.u32 %v177, 16
      %v245 = vrot.slane %v243, 4
      %v246 = vor.u32 %v245, %v241
      %v247 = vrot.slane %v246, 4
      %v249 = vshll.u32 %v199, 16
      %v251 = vrot.slane %v249, 5
      %v252 = vsel %vm204, %v247, %v251
      %v254 = vshrl.u32 %v178, 16
      %v256 = vrot.slane %v254, 4
      %v257 = vshll.u32 %v178, 16
      %v259 = vrot.slane %v257, 5
      %v260 = vor.u32 %v256, %v259
      %v261 = vrot.slane %v260, 4
      %v263 = vshll.u32 %v179, 16
      %v265 = vrot.slane %v263, 5
      %v266 = vsel %vm204, %v261, %v265
      %v267 = vshrl.u32 %v179, 16
      %v269 = vrot.slane %v267, 4
      %v270 = vor.u32 %v269, %v265
      %v271 = vrot.slane %v270, 4
      %v273 = vshll.u32 %v200, 16
      %v275 = vrot.slane %v273, 5
      %v276 = vsel %vm204, %v271, %v275
      %v278 = vshrl.u32 %v180, 16
      %v280 = vrot.slane %v278, 4
      %v281 = vshll.u32 %v180, 16
      %v283 = vrot.slane %v281, 5
      %v284 = vor.u32 %v280, %v283
      %v285 = vrot.slane %v284, 4
      %v287 = vshll.u32 %v181, 16
      %v289 = vrot.slane %v287, 5
      %v290 = vsel %vm204, %v285, %v289
      %v291 = vshrl.u32 %v181, 16
      %v293 = vrot.slane %v291, 4
      %v294 = vor.u32 %v293, %v289
      %v295 = vrot.slane %v294, 4
      %v297 = vshll.u32 %v201, 16
      %v299 = vrot.slane %v297, 5
      %v300 = vsel %vm204, %v295, %v299
      %v301 = vld [vmem:[%s1 + $0x40] sm:$0xf]
      %v302 = vld [vmem:[%s1 + $0x44] sm:$0xf]
      %v303 = vld [vmem:[%s1 + $0x48] sm:$0xf]
      %v304 = vld [vmem:[%s1 + $0x4c] sm:$0xf]
      %v305 = vld [vmem:[%s1 + $0x50] sm:$0xf]
      %v306 = vld [vmem:[%s1 + $0x54] sm:$0xf]
      %v307 = vld [vmem:[%s1 + $0x58] sm:$0xf]
      %v308 = vld [vmem:[%s1 + $0x5c] sm:$0xf]
      %v309 = vld [vmem:[%s1 + $0x60] sm:$0xf]
      %v310 = vld [vmem:[%s1 + $0x64] sm:$0xf]
      %v311 = vld [vmem:[%s1 + $0x68] sm:$0xf]
      %v312 = vld [vmem:[%s1 + $0x6c] sm:$0xf]
      %v313 = vld [vmem:[%s1 + $0x70] sm:$0xf]
      %v314 = vld [vmem:[%s1 + $0x74] sm:$0xf]
      %v315 = vld [vmem:[%s1 + $0x78] sm:$0xf]
      %v316 = vld [vmem:[%s1 + $0x7c] sm:$0xf]
      %v317 = vunpack.c.l.b16 %v218
      %v318 = vunpack.c.l.b16 %v228
      %v319 = vunpack.c.l.b16 %v242
      %v320 = vunpack.c.l.b16 %v252
      %v321 = vunpack.c.l.b16 %v266
      %v322 = vunpack.c.l.b16 %v276
      %v323 = vunpack.c.l.b16 %v290
      %v324 = vunpack.c.l.b16 %v300
      %v325 = vpack.c.b16 %v318, %v317
      %v326 = vpack.c.b16 %v320, %v319
      %v327 = vpack.c.b16 %v322, %v321
      %v328 = vpack.c.b16 %v324, %v323
      %v349 = vunpack.c.l.b16 %v301
      %v350 = vunpack.c.l.b16 %v302
      %v351 = vunpack.c.l.b16 %v303
      %v352 = vunpack.c.l.b16 %v304
      %v353 = vunpack.c.l.b16 %v305
      %v354 = vunpack.c.l.b16 %v306
      %v355 = vunpack.c.l.b16 %v307
      %v356 = vunpack.c.l.b16 %v308
      %v357 = vunpack.c.l.b16 %v309
      %v358 = vunpack.c.l.b16 %v310
      %v359 = vunpack.c.l.b16 %v311
      %v360 = vunpack.c.l.b16 %v312
      %v361 = vunpack.c.l.b16 %v313
      %v362 = vunpack.c.l.b16 %v314
      %v363 = vunpack.c.l.b16 %v315
      %v364 = vunpack.c.l.b16 %v316
      %v365 = vpack.c.b16 %v350, %v349
      %v366 = vpack.c.b16 %v352, %v351
      %v367 = vpack.c.b16 %v354, %v353
      %v368 = vpack.c.b16 %v356, %v355
      %v369 = vpack.c.b16 %v358, %v357
      %v370 = vpack.c.b16 %v360, %v359
      %v371 = vpack.c.b16 %v362, %v361
      %v372 = vpack.c.b16 %v364, %v363
      %381 = vmatprep.subr.bf16.mxu0 0
      %382 = vmatpush1.bf16.msra.mxu0 %v365
      %383 = vmatprep.subr.bf16.mxu0 0
      %384 = vmatpush1.bf16.msra.mxu0 %v366
      %385 = vmatprep.subr.bf16.mxu0 0
      %386 = vmatpush1.bf16.msra.mxu0 %v367
      %387 = vmatprep.subr.bf16.mxu0 0
      %388 = vmatpush1.bf16.msra.mxu0 %v368
      %389 = vmatprep.subr.bf16.mxu0 0
      %390 = vmatpush1.bf16.msra.mxu0 %v369
      %391 = vmatprep.subr.bf16.mxu0 0
      %392 = vmatpush1.bf16.msra.mxu0 %v370
      %393 = vmatprep.subr.bf16.mxu0 0
      %394 = vmatpush1.bf16.msra.mxu0 %v371
      %395 = vmatprep.subr.bf16.mxu0 0
      %396 = vmatpush1.bf16.msra.mxu0 %v372
      %397 = vmatprep.subr.bf16.mxu0 0
      %398 = vmatpush1.bf16.msra.mxu0 0
      %399 = vmatprep.subr.bf16.mxu0 0
      %400 = vmatpush1.bf16.msra.mxu0 0
      %401 = vmatprep.subr.bf16.mxu0 0
      %402 = vmatpush1.bf16.msra.mxu0 0
      %403 = vmatprep.subr.bf16.mxu0 0
      %404 = vmatpush1.bf16.msra.mxu0 0
      %405 = vmatprep.subr.bf16.mxu0 0
      %406 = vmatpush1.bf16.msra.mxu0 0
      %407 = vmatprep.subr.bf16.mxu0 0
      %408 = vmatpush1.bf16.msra.mxu0 0
      %409 = vmatprep.subr.bf16.mxu0 0
      %410 = vmatpush1.bf16.msra.mxu0 0
      %411 = vmatprep.subr.bf16.mxu0 0
      %412 = vmatpush1.bf16.msra.mxu0 0
      %413 = vmatprep.mubr.bf16.mxu0 0
      %414 = vmatmul.mubr.bf16.gmra.mrb[0].mxu0 %v325
      %v415 = vpop.f32.mrb[0].mxu0
      %v416 = vadd.f32 0.0, %v415
      %v417 = vpop.f32.mrb[0].mxu0
      %v418 = vpop.f32.mrb[0].mxu0
      %v419 = vadd.f32 0.0, %v418
      %v420 = vpop.f32.mrb[0].mxu0
      %421 = vmatprep.mubr.bf16.mxu0 0
      %422 = vmatmul.mubr.bf16.gmra.mrb[0].mxu0 %v326
      %v423 = vpop.f32.mrb[0].mxu0
      %v424 = vadd.f32 0.0, %v423
      %v425 = vpop.f32.mrb[0].mxu0
      %v426 = vpop.f32.mrb[0].mxu0
      %v427 = vadd.f32 0.0, %v426
      %v428 = vpop.f32.mrb[0].mxu0
      %429 = vmatprep.mubr.bf16.mxu0 0
      %430 = vmatmul.mubr.bf16.gmra.mrb[0].mxu0 %v327
      %v431 = vpop.f32.mrb[0].mxu0
      %v432 = vadd.f32 0.0, %v431
      %v433 = vpop.f32.mrb[0].mxu0
      %v434 = vpop.f32.mrb[0].mxu0
      %v435 = vadd.f32 0.0, %v434
      %v436 = vpop.f32.mrb[0].mxu0
      %437 = vmatprep.mubr.bf16.mxu0 0
      %438 = vmatmul.mubr.bf16.gmra.mrb[0].mxu0 %v328
      %v439 = vpop.f32.mrb[0].mxu0
      %v440 = vadd.f32 0.0, %v439
      %v441 = vpop.f32.mrb[0].mxu0
      %v442 = vpop.f32.mrb[0].mxu0
      %v443 = vadd.f32 0.0, %v442
      %v444 = vpop.f32.mrb[0].mxu0
      %445 = vdwg.mxu0
      %v454 = vunpack.c.l.b16 %v174
      %v455 = vunpack.c.l.b16 %v175
      %v456 = vunpack.c.l.b16 %v176
      %v457 = vunpack.c.l.b16 %v177
      %v458 = vunpack.c.l.b16 %v178
      %v459 = vunpack.c.l.b16 %v179
      %v460 = vunpack.c.l.b16 %v180
      %v461 = vunpack.c.l.b16 %v181
      %v462 = vpack.c.b16 %v455, %v454
      %v463 = vpack.c.b16 %v457, %v456
      %v464 = vpack.c.b16 %v459, %v458
      %v465 = vpack.c.b16 %v461, %v460
      %v486 = vunpack.c.l.b16 %v182
      %v487 = vunpack.c.l.b16 %v183
      %v488 = vunpack.c.l.b16 %v184
      %v489 = vunpack.c.l.b16 %v185
      %v490 = vunpack.c.l.b16 %v186
      %v491 = vunpack.c.l.b16 %v187
      %v492 = vunpack.c.l.b16 %v188
      %v493 = vunpack.c.l.b16 %v189
      %v494 = vunpack.c.l.b16 %v190
      %v495 = vunpack.c.l.b16 %v191
      %v496 = vunpack.c.l.b16 %v192
      %v497 = vunpack.c.l.b16 %v193
      %v498 = vunpack.c.l.b16 %v194
      %v499 = vunpack.c.l.b16 %v195
      %v500 = vunpack.c.l.b16 %v196
      %v501 = vunpack.c.l.b16 %v197
      %v502 = vpack.c.b16 %v487, %v486
      %v503 = vpack.c.b16 %v489, %v488
      %v504 = vpack.c.b16 %v491, %v490
      %v505 = vpack.c.b16 %v493, %v492
      %v506 = vpack.c.b16 %v495, %v494
      %v507 = vpack.c.b16 %v497, %v496
      %v508 = vpack.c.b16 %v499, %v498
      %v509 = vpack.c.b16 %v501, %v500
      %518 = vmatprep.subr.bf16.mxu0 0
      %519 = vmatpush1.bf16.msra.mxu0 %v502
      %520 = vmatprep.subr.bf16.mxu0 0
      %521 = vmatpush1.bf16.msra.mxu0 %v503
      %522 = vmatprep.subr.bf16.mxu0 0
      %523 = vmatpush1.bf16.msra.mxu0 %v504
      %524 = vmatprep.subr.bf16.mxu0 0
      %525 = vmatpush1.bf16.msra.mxu0 %v505
      %526 = vmatprep.subr.bf16.mxu0 0
      %527 = vmatpush1.bf16.msra.mxu0 %v506
      %528 = vmatprep.subr.bf16.mxu0 0
      %529 = vmatpush1.bf16.msra.mxu0 %v507
      %530 = vmatprep.subr.bf16.mxu0 0
      %531 = vmatpush1.bf16.msra.mxu0 %v508
      %532 = vmatprep.subr.bf16.mxu0 0
      %533 = vmatpush1.bf16.msra.mxu0 %v509
      %534 = vmatprep.subr.bf16.mxu0 0
      %535 = vmatpush1.bf16.msra.mxu0 0
      %536 = vmatprep.subr.bf16.mxu0 0
      %537 = vmatpush1.bf16.msra.mxu0 0
      %538 = vmatprep.subr.bf16.mxu0 0
      %539 = vmatpush1.bf16.msra.mxu0 0
      %540 = vmatprep.subr.bf16.mxu0 0
      %541 = vmatpush1.bf16.msra.mxu0 0
      %542 = vmatprep.subr.bf16.mxu0 0
      %543 = vmatpush1.bf16.msra.mxu0 0
      %544 = vmatprep.subr.bf16.mxu0 0
      %545 = vmatpush1.bf16.msra.mxu0 0
      %546 = vmatprep.subr.bf16.mxu0 0
      %547 = vmatpush1.bf16.msra.mxu0 0
      %548 = vmatprep.subr.bf16.mxu0 0
      %549 = vmatpush1.bf16.msra.mxu0 0
      %550 = vmatprep.mubr.bf16.mxu0 0
      %551 = vmatmul.mubr.bf16.gmra.mrb[0].mxu0 %v462
      %v552 = vpop.f32.mrb[0].mxu0
      %v553 = vadd.f32 %v416, %v552
      %v554 = vpop.f32.mrb[0].mxu0
      %v555 = vpop.f32.mrb[0].mxu0
      %v556 = vadd.f32 %v419, %v555
      %v557 = vpop.f32.mrb[0].mxu0
      %558 = vmatprep.mubr.bf16.mxu0 0
      %559 = vmatmul.mubr.bf16.gmra.mrb[0].mxu0 %v463
      %v560 = vpop.f32.mrb[0].mxu0
      %v561 = vadd.f32 %v424, %v560
      %v562 = vpop.f32.mrb[0].mxu0
      %v563 = vpop.f32.mrb[0].mxu0
      %v564 = vadd.f32 %v427, %v563
      %v565 = vpop.f32.mrb[0].mxu0
      %566 = vmatprep.mubr.bf16.mxu0 0
      %567 = vmatmul.mubr.bf16.gmra.mrb[0].mxu0 %v464
      %v568 = vpop.f32.mrb[0].mxu0
      %v569 = vadd.f32 %v432, %v568
      %v570 = vpop.f32.mrb[0].mxu0
      %v571 = vpop.f32.mrb[0].mxu0
      %v572 = vadd.f32 %v435, %v571
      %v573 = vpop.f32.mrb[0].mxu0
      %574 = vmatprep.mubr.bf16.mxu0 0
      %575 = vmatmul.mubr.bf16.gmra.mrb[0].mxu0 %v465
      %v576 = vpop.f32.mrb[0].mxu0
      %v577 = vadd.f32 %v440, %v576
      %v578 = vpop.f32.mrb[0].mxu0
      %v579 = vpop.f32.mrb[0].mxu0
      %v580 = vadd.f32 %v443, %v579
      %v581 = vpop.f32.mrb[0].mxu0
      %582 = vdwg.mxu0
      %v583 = vld [vmem:[%s173] sm:$0xe]
      %v584 = vld [vmem:[%s173 + $0xc] sm:$0xe]
      %v585 = vld [vmem:[%s173 + $0x18] sm:$0xe]
      %v586 = vld [vmem:[%s173 + $0x24] sm:$0xe]
      %vm595 = vcmask 1042432
      %vm596 = vcmask 1046532
      %vm597 = vmor %vm595, %vm596
      %v598 = vrot.slane %v583, 5
      %v599 = vrot.slane %v598, 4
      %v600 = vrot.slane %v175, 5
      %v601 = vsel %vm597, %v599, %v600
      %v602 = vrot.slane %v600, 4
      %v603 = vrot.slane %v198, 5
      %v604 = vsel %vm597, %v602, %v603
      %v605 = vrot.slane %v584, 5
      %v606 = vrot.slane %v605, 4
      %v607 = vrot.slane %v177, 5
      %v608 = vsel %vm597, %v606, %v607
      %v609 = vrot.slane %v607, 4
      %v610 = vrot.slane %v199, 5
      %v611 = vsel %vm597, %v609, %v610
      %v612 = vrot.slane %v585, 5
      %v613 = vrot.slane %v612, 4
      %v614 = vrot.slane %v179, 5
      %v615 = vsel %vm597, %v613, %v614
      %v616 = vrot.slane %v614, 4
      %v617 = vrot.slane %v200, 5
      %v618 = vsel %vm597, %v616, %v617
      %v619 = vrot.slane %v586, 5
      %v620 = vrot.slane %v619, 4
      %v621 = vrot.slane %v181, 5
      %v622 = vsel %vm597, %v620, %v621
      %v623 = vrot.slane %v621, 4
      %v624 = vrot.slane %v201, 5
      %v625 = vsel %vm597, %v623, %v624
      %v626 = vld [vmem:[%s1 + $0x80] sm:$0xf]
      %v627 = vld [vmem:[%s1 + $0x84] sm:$0xf]
      %v628 = vld [vmem:[%s1 + $0x88] sm:$0xf]
      %v629 = vld [vmem:[%s1 + $0x8c] sm:$0xf]
      %v630 = vld [vmem:[%s1 + $0x90] sm:$0xf]
      %v631 = vld [vmem:[%s1 + $0x94] sm:$0xf]
      %v632 = vld [vmem:[%s1 + $0x98] sm:$0xf]
      %v633 = vld [vmem:[%s1 + $0x9c] sm:$0xf]
      %v634 = vld [vmem:[%s1 + $0xa0] sm:$0xf]
      %v635 = vld [vmem:[%s1 + $0xa4] sm:$0xf]
      %v636 = vld [vmem:[%s1 + $0xa8] sm:$0xf]
      %v637 = vld [vmem:[%s1 + $0xac] sm:$0xf]
      %v638 = vld [vmem:[%s1 + $0xb0] sm:$0xf]
      %v639 = vld [vmem:[%s1 + $0xb4] sm:$0xf]
      %v640 = vld [vmem:[%s1 + $0xb8] sm:$0xf]
      %v641 = vld [vmem:[%s1 + $0xbc] sm:$0xf]
      %v642 = vunpack.c.l.b16 %v601
      %v643 = vunpack.c.l.b16 %v604
      %v644 = vunpack.c.l.b16 %v608
      %v645 = vunpack.c.l.b16 %v611
      %v646 = vunpack.c.l.b16 %v615
      %v647 = vunpack.c.l.b16 %v618
      %v648 = vunpack.c.l.b16 %v622
      %v649 = vunpack.c.l.b16 %v625
      %v650 = vpack.c.b16 %v643, %v642
      %v651 = vpack.c.b16 %v645, %v644
      %v652 = vpack.c.b16 %v647, %v646
      %v653 = vpack.c.b16 %v649, %v648
      %v674 = vunpack.c.l.b16 %v626
      %v675 = vunpack.c.l.b16 %v627
      %v676 = vunpack.c.l.b16 %v628
      %v677 = vunpack.c.l.b16 %v629
      %v678 = vunpack.c.l.b16 %v630
      %v679 = vunpack.c.l.b16 %v631
      %v680 = vunpack.c.l.b16 %v632
      %v681 = vunpack.c.l.b16 %v633
      %v682 = vunpack.c.l.b16 %v634
      %v683 = vunpack.c.l.b16 %v635
      %v684 = vunpack.c.l.b16 %v636
      %v685 = vunpack.c.l.b16 %v637
      %v686 = vunpack.c.l.b16 %v638
      %v687 = vunpack.c.l.b16 %v639
      %v688 = vunpack.c.l.b16 %v640
      %v689 = vunpack.c.l.b16 %v641
      %v690 = vpack.c.b16 %v675, %v674
      %v691 = vpack.c.b16 %v677, %v676
      %v692 = vpack.c.b16 %v679, %v678
      %v693 = vpack.c.b16 %v681, %v680
      %v694 = vpack.c.b16 %v683, %v682
      %v695 = vpack.c.b16 %v685, %v684
      %v696 = vpack.c.b16 %v687, %v686
      %v697 = vpack.c.b16 %v689, %v688
      %706 = vmatprep.subr.bf16.mxu0 0
      %707 = vmatpush1.bf16.msra.mxu0 %v690
      %708 = vmatprep.subr.bf16.mxu0 0
      %709 = vmatpush1.bf16.msra.mxu0 %v691
      %710 = vmatprep.subr.bf16.mxu0 0
      %711 = vmatpush1.bf16.msra.mxu0 %v692
      %712 = vmatprep.subr.bf16.mxu0 0
      %713 = vmatpush1.bf16.msra.mxu0 %v693
      %714 = vmatprep.subr.bf16.mxu0 0
      %715 = vmatpush1.bf16.msra.mxu0 %v694
      %716 = vmatprep.subr.bf16.mxu0 0
      %717 = vmatpush1.bf16.msra.mxu0 %v695
      %718 = vmatprep.subr.bf16.mxu0 0
      %719 = vmatpush1.bf16.msra.mxu0 %v696
      %720 = vmatprep.subr.bf16.mxu0 0
      %721 = vmatpush1.bf16.msra.mxu0 %v697
      %722 = vmatprep.subr.bf16.mxu0 0
      %723 = vmatpush1.bf16.msra.mxu0 0
      %724 = vmatprep.subr.bf16.mxu0 0
      %725 = vmatpush1.bf16.msra.mxu0 0
      %726 = vmatprep.subr.bf16.mxu0 0
      %727 = vmatpush1.bf16.msra.mxu0 0
      %728 = vmatprep.subr.bf16.mxu0 0
      %729 = vmatpush1.bf16.msra.mxu0 0
      %730 = vmatprep.subr.bf16.mxu0 0
      %731 = vmatpush1.bf16.msra.mxu0 0
      %732 = vmatprep.subr.bf16.mxu0 0
      %733 = vmatpush1.bf16.msra.mxu0 0
      %734 = vmatprep.subr.bf16.mxu0 0
      %735 = vmatpush1.bf16.msra.mxu0 0
      %736 = vmatprep.subr.bf16.mxu0 0
      %737 = vmatpush1.bf16.msra.mxu0 0
      %738 = vmatprep.mubr.bf16.mxu0 0
      %739 = vmatmul.mubr.bf16.gmra.mrb[0].mxu0 %v650
      %v740 = vpop.f32.mrb[0].mxu0
      %v741 = vadd.f32 0.0, %v740
      %v742 = vpop.f32.mrb[0].mxu0
      %v743 = vpop.f32.mrb[0].mxu0
      %v744 = vadd.f32 0.0, %v743
      %v745 = vpop.f32.mrb[0].mxu0
      %746 = vmatprep.mubr.bf16.mxu0 0
      %747 = vmatmul.mubr.bf16.gmra.mrb[0].mxu0 %v651
      %v748 = vpop.f32.mrb[0].mxu0
      %v749 = vadd.f32 0.0, %v748
      %v750 = vpop.f32.mrb[0].mxu0
      %v751 = vpop.f32.mrb[0].mxu0
      %v752 = vadd.f32 0.0, %v751
      %v753 = vpop.f32.mrb[0].mxu0
      %754 = vmatprep.mubr.bf16.mxu0 0
      %755 = vmatmul.mubr.bf16.gmra.mrb[0].mxu0 %v652
      %v756 = vpop.f32.mrb[0].mxu0
      %v757 = vadd.f32 0.0, %v756
      %v758 = vpop.f32.mrb[0].mxu0
      %v759 = vpop.f32.mrb[0].mxu0
      %v760 = vadd.f32 0.0, %v759
      %v761 = vpop.f32.mrb[0].mxu0
      %762 = vmatprep.mubr.bf16.mxu0 0
      %763 = vmatmul.mubr.bf16.gmra.mrb[0].mxu0 %v653
      %v764 = vpop.f32.mrb[0].mxu0
      %v765 = vadd.f32 0.0, %v764
      %v766 = vpop.f32.mrb[0].mxu0
      %v767 = vpop.f32.mrb[0].mxu0
      %v768 = vadd.f32 0.0, %v767
      %v769 = vpop.f32.mrb[0].mxu0
      %770 = vdwg.mxu0
      %v771 = vadd.f32 %v553, %v741
      %v772 = vadd.f32 %v556, %v744
      %v773 = vadd.f32 %v561, %v749
      %v774 = vadd.f32 %v564, %v752
      %v775 = vadd.f32 %v569, %v757
      %v776 = vadd.f32 %v572, %v760
      %v777 = vadd.f32 %v577, %v765
      %v778 = vadd.f32 %v580, %v768
      %s779 = sadd.s32 %s170, 1
      %s780 = smul.u32 %s779, 3
      %s781 = smul.addr %s780, 4
      %s782 = scalar_lea.vmem %s157, %s781
      %v783 = vld [vmem:[%s782] sm:$0xf]
      %v784 = vld [vmem:[%s782 + $0x4] sm:$0xf]
      %v785 = vld [vmem:[%s782 + $0xc] sm:$0xf]
      %v786 = vld [vmem:[%s782 + $0x10] sm:$0xf]
      %v787 = vld [vmem:[%s782 + $0x18] sm:$0xf]
      %v788 = vld [vmem:[%s782 + $0x1c] sm:$0xf]
      %v789 = vld [vmem:[%s782 + $0x24] sm:$0xf]
      %v790 = vld [vmem:[%s782 + $0x28] sm:$0xf]
      %v791 = vld [vmem:[%s1 + $0xc0] sm:$0xf]
      %v792 = vld [vmem:[%s1 + $0xc4] sm:$0xf]
      %v793 = vld [vmem:[%s1 + $0xc8] sm:$0xf]
      %v794 = vld [vmem:[%s1 + $0xcc] sm:$0xf]
      %v795 = vld [vmem:[%s1 + $0xd0] sm:$0xf]
      %v796 = vld [vmem:[%s1 + $0xd4] sm:$0xf]
      %v797 = vld [vmem:[%s1 + $0xd8] sm:$0xf]
      %v798 = vld [vmem:[%s1 + $0xdc] sm:$0xf]
      %v799 = vld [vmem:[%s1 + $0xe0] sm:$0xf]
      %v800 = vld [vmem:[%s1 + $0xe4] sm:$0xf]
      %v801 = vld [vmem:[%s1 + $0xe8] sm:$0xf]
      %v802 = vld [vmem:[%s1 + $0xec] sm:$0xf]
      %v803 = vld [vmem:[%s1 + $0xf0] sm:$0xf]
      %v804 = vld [vmem:[%s1 + $0xf4] sm:$0xf]
      %v805 = vld [vmem:[%s1 + $0xf8] sm:$0xf]
      %v806 = vld [vmem:[%s1 + $0xfc] sm:$0xf]
      %v815 = vunpack.c.l.b16 %v783
      %v816 = vunpack.c.l.b16 %v784
      %v817 = vunpack.c.l.b16 %v785
      %v818 = vunpack.c.l.b16 %v786
      %v819 = vunpack.c.l.b16 %v787
      %v820 = vunpack.c.l.b16 %v788
      %v821 = vunpack.c.l.b16 %v789
      %v822 = vunpack.c.l.b16 %v790
      %v823 = vpack.c.b16 %v816, %v815
      %v824 = vpack.c.b16 %v818, %v817
      %v825 = vpack.c.b16 %v820, %v819
      %v826 = vpack.c.b16 %v822, %v821
      %v847 = vunpack.c.l.b16 %v791
      %v848 = vunpack.c.l.b16 %v792
      %v849 = vunpack.c.l.b16 %v793
      %v850 = vunpack.c.l.b16 %v794
      %v851 = vunpack.c.l.b16 %v795
      %v852 = vunpack.c.l.b16 %v796
      %v853 = vunpack.c.l.b16 %v797
      %v854 = vunpack.c.l.b16 %v798
      %v855 = vunpack.c.l.b16 %v799
      %v856 = vunpack.c.l.b16 %v800
      %v857 = vunpack.c.l.b16 %v801
      %v858 = vunpack.c.l.b16 %v802
      %v859 = vunpack.c.l.b16 %v803
      %v860 = vunpack.c.l.b16 %v804
      %v861 = vunpack.c.l.b16 %v805
      %v862 = vunpack.c.l.b16 %v806
      %v863 = vpack.c.b16 %v848, %v847
      %v864 = vpack.c.b16 %v850, %v849
      %v865 = vpack.c.b16 %v852, %v851
      %v866 = vpack.c.b16 %v854, %v853
      %v867 = vpack.c.b16 %v856, %v855
      %v868 = vpack.c.b16 %v858, %v857
      %v869 = vpack.c.b16 %v860, %v859
      %v870 = vpack.c.b16 %v862, %v861
      %879 = vmatprep.subr.bf16.mxu0 0
      %880 = vmatpush1.bf16.msra.mxu0 %v863
      %881 = vmatprep.subr.bf16.mxu0 0
      %882 = vmatpush1.bf16.msra.mxu0 %v864
      %883 = vmatprep.subr.bf16.mxu0 0
      %884 = vmatpush1.bf16.msra.mxu0 %v865
      %885 = vmatprep.subr.bf16.mxu0 0
      %886 = vmatpush1.bf16.msra.mxu0 %v866
      %887 = vmatprep.subr.bf16.mxu0 0
      %888 = vmatpush1.bf16.msra.mxu0 %v867
      %889 = vmatprep.subr.bf16.mxu0 0
      %890 = vmatpush1.bf16.msra.mxu0 %v868
      %891 = vmatprep.subr.bf16.mxu0 0
      %892 = vmatpush1.bf16.msra.mxu0 %v869
      %893 = vmatprep.subr.bf16.mxu0 0
      %894 = vmatpush1.bf16.msra.mxu0 %v870
      %895 = vmatprep.subr.bf16.mxu0 0
      %896 = vmatpush1.bf16.msra.mxu0 0
      %897 = vmatprep.subr.bf16.mxu0 0
      %898 = vmatpush1.bf16.msra.mxu0 0
      %899 = vmatprep.subr.bf16.mxu0 0
      %900 = vmatpush1.bf16.msra.mxu0 0
      %901 = vmatprep.subr.bf16.mxu0 0
      %902 = vmatpush1.bf16.msra.mxu0 0
      %903 = vmatprep.subr.bf16.mxu0 0
      %904 = vmatpush1.bf16.msra.mxu0 0
      %905 = vmatprep.subr.bf16.mxu0 0
      %906 = vmatpush1.bf16.msra.mxu0 0
      %907 = vmatprep.subr.bf16.mxu0 0
      %908 = vmatpush1.bf16.msra.mxu0 0
      %909 = vmatprep.subr.bf16.mxu0 0
      %910 = vmatpush1.bf16.msra.mxu0 0
      %911 = vmatprep.mubr.bf16.mxu0 0
      %912 = vmatmul.mubr.bf16.gmra.mrb[0].mxu0 %v823
      %v913 = vpop.f32.mrb[0].mxu0
      %v914 = vadd.f32 0.0, %v913
      %v915 = vpop.f32.mrb[0].mxu0
      %v916 = vpop.f32.mrb[0].mxu0
      %v917 = vadd.f32 0.0, %v916
      %v918 = vpop.f32.mrb[0].mxu0
      %919 = vmatprep.mubr.bf16.mxu0 0
      %920 = vmatmul.mubr.bf16.gmra.mrb[0].mxu0 %v824
      %v921 = vpop.f32.mrb[0].mxu0
      %v922 = vadd.f32 0.0, %v921
      %v923 = vpop.f32.mrb[0].mxu0
      %v924 = vpop.f32.mrb[0].mxu0
      %v925 = vadd.f32 0.0, %v924
      %v926 = vpop.f32.mrb[0].mxu0
      %927 = vmatprep.mubr.bf16.mxu0 0
      %928 = vmatmul.mubr.bf16.gmra.mrb[0].mxu0 %v825
      %v929 = vpop.f32.mrb[0].mxu0
      %v930 = vadd.f32 0.0, %v929
      %v931 = vpop.f32.mrb[0].mxu0
      %v932 = vpop.f32.mrb[0].mxu0
      %v933 = vadd.f32 0.0, %v932
      %v934 = vpop.f32.mrb[0].mxu0
      %935 = vmatprep.mubr.bf16.mxu0 0
      %936 = vmatmul.mubr.bf16.gmra.mrb[0].mxu0 %v826
      %v937 = vpop.f32.mrb[0].mxu0
      %v938 = vadd.f32 0.0, %v937
      %v939 = vpop.f32.mrb[0].mxu0
      %v940 = vpop.f32.mrb[0].mxu0
      %v941 = vadd.f32 0.0, %v940
      %v942 = vpop.f32.mrb[0].mxu0
      %943 = vdwg.mxu0
      %v944 = vadd.f32 %v771, %v914
      %v945 = vadd.f32 %v772, %v917
      %v946 = vadd.f32 %v773, %v922
      %v947 = vadd.f32 %v774, %v925
      %v948 = vadd.f32 %v775, %v930
      %v949 = vadd.f32 %v776, %v933
      %v950 = vadd.f32 %v777, %v938
      %v951 = vadd.f32 %v778, %v941
      %v952 = vld [vmem:[%s782] sm:$0xf]
      %v953 = vld [vmem:[%s782 + $0x4] sm:$0xf]
      %v954 = vld [vmem:[%s782 + $0x8] sm:$0x1]
      %v955 = vld [vmem:[%s782 + $0xc] sm:$0xf]
      %v956 = vld [vmem:[%s782 + $0x10] sm:$0xf]
      %v957 = vld [vmem:[%s782 + $0x14] sm:$0x1]
      %v958 = vld [vmem:[%s782 + $0x18] sm:$0xf]
      %v959 = vld [vmem:[%s782 + $0x1c] sm:$0xf]
      %v960 = vld [vmem:[%s782 + $0x20] sm:$0x1]
      %v961 = vld [vmem:[%s782 + $0x24] sm:$0xf]
      %v962 = vld [vmem:[%s782 + $0x28] sm:$0xf]
      %v963 = vld [vmem:[%s782 + $0x2c] sm:$0x1]
      %v965 = vshrl.u32 %v952, 16
      %v967 = vrot.slane %v965, 4
      %v968 = vshll.u32 %v952, 16
      %v970 = vrot.slane %v968, 5
      %v971 = vor.u32 %v967, %v970
      %v972 = vrot.slane %v971, 4
      %v974 = vshll.u32 %v953, 16
      %v976 = vrot.slane %v974, 5
      %v977 = vsel %vm204, %v972, %v976
      %v978 = vshrl.u32 %v953, 16
      %v980 = vrot.slane %v978, 4
      %v981 = vor.u32 %v980, %v976
      %v982 = vrot.slane %v981, 4
      %v984 = vshll.u32 %v954, 16
      %v986 = vrot.slane %v984, 5
      %v987 = vsel %vm204, %v982, %v986
      %v989 = vshrl.u32 %v955, 16
      %v991 = vrot.slane %v989, 4
      %v992 = vshll.u32 %v955, 16
      %v994 = vrot.slane %v992, 5
      %v995 = vor.u32 %v991, %v994
      %v996 = vrot.slane %v995, 4
      %v998 = vshll.u32 %v956, 16
      %v1000 = vrot.slane %v998, 5
      %v1001 = vsel %vm204, %v996, %v1000
      %v1002 = vshrl.u32 %v956, 16
      %v1004 = vrot.slane %v1002, 4
      %v1005 = vor.u32 %v1004, %v1000
      %v1006 = vrot.slane %v1005, 4
      %v1008 = vshll.u32 %v957, 16
      %v1010 = vrot.slane %v1008, 5
      %v1011 = vsel %vm204, %v1006, %v1010
      %v1013 = vshrl.u32 %v958, 16
      %v1015 = vrot.slane %v1013, 4
      %v1016 = vshll.u32 %v958, 16
      %v1018 = vrot.slane %v1016, 5
      %v1019 = vor.u32 %v1015, %v1018
      %v1020 = vrot.slane %v1019, 4
      %v1022 = vshll.u32 %v959, 16
      %v1024 = vrot.slane %v1022, 5
      %v1025 = vsel %vm204, %v1020, %v1024
      %v1026 = vshrl.u32 %v959, 16
      %v1028 = vrot.slane %v1026, 4
      %v1029 = vor.u32 %v1028, %v1024
      %v1030 = vrot.slane %v1029, 4
      %v1032 = vshll.u32 %v960, 16
      %v1034 = vrot.slane %v1032, 5
      %v1035 = vsel %vm204, %v1030, %v1034
      %v1037 = vshrl.u32 %v961, 16
      %v1039 = vrot.slane %v1037, 4
      %v1040 = vshll.u32 %v961, 16
      %v1042 = vrot.slane %v1040, 5
      %v1043 = vor.u32 %v1039, %v1042
      %v1044 = vrot.slane %v1043, 4
      %v1046 = vshll.u32 %v962, 16
      %v1048 = vrot.slane %v1046, 5
      %v1049 = vsel %vm204, %v1044, %v1048
      %v1050 = vshrl.u32 %v962, 16
      %v1052 = vrot.slane %v1050, 4
      %v1053 = vor.u32 %v1052, %v1048
      %v1054 = vrot.slane %v1053, 4
      %v1056 = vshll.u32 %v963, 16
      %v1058 = vrot.slane %v1056, 5
      %v1059 = vsel %vm204, %v1054, %v1058
      %v1060 = vld [vmem:[%s1 + $0x100] sm:$0xf]
      %v1061 = vld [vmem:[%s1 + $0x104] sm:$0xf]
      %v1062 = vld [vmem:[%s1 + $0x108] sm:$0xf]
      %v1063 = vld [vmem:[%s1 + $0x10c] sm:$0xf]
      %v1064 = vld [vmem:[%s1 + $0x110] sm:$0xf]
      %v1065 = vld [vmem:[%s1 + $0x114] sm:$0xf]
      %v1066 = vld [vmem:[%s1 + $0x118] sm:$0xf]
      %v1067 = vld [vmem:[%s1 + $0x11c] sm:$0xf]
      %v1068 = vld [vmem:[%s1 + $0x120] sm:$0xf]
      %v1069 = vld [vmem:[%s1 + $0x124] sm:$0xf]
      %v1070 = vld [vmem:[%s1 + $0x128] sm:$0xf]
      %v1071 = vld [vmem:[%s1 + $0x12c] sm:$0xf]
      %v1072 = vld [vmem:[%s1 + $0x130] sm:$0xf]
      %v1073 = vld [vmem:[%s1 + $0x134] sm:$0xf]
      %v1074 = vld [vmem:[%s1 + $0x138] sm:$0xf]
      %v1075 = vld [vmem:[%s1 + $0x13c] sm:$0xf]
      %v1076 = vunpack.c.l.b16 %v977
      %v1077 = vunpack.c.l.b16 %v987
      %v1078 = vunpack.c.l.b16 %v1001
      %v1079 = vunpack.c.l.b16 %v1011
      %v1080 = vunpack.c.l.b16 %v1025
      %v1081 = vunpack.c.l.b16 %v1035
      %v1082 = vunpack.c.l.b16 %v1049
      %v1083 = vunpack.c.l.b16 %v1059
      %v1084 = vpack.c.b16 %v1077, %v1076
      %v1085 = vpack.c.b16 %v1079, %v1078
      %v1086 = vpack.c.b16 %v1081, %v1080
      %v1087 = vpack.c.b16 %v1083, %v1082
      %v1108 = vunpack.c.l.b16 %v1060
      %v1109 = vunpack.c.l.b16 %v1061
      %v1110 = vunpack.c.l.b16 %v1062
      %v1111 = vunpack.c.l.b16 %v1063
      %v1112 = vunpack.c.l.b16 %v1064
      %v1113 = vunpack.c.l.b16 %v1065
      %v1114 = vunpack.c.l.b16 %v1066
      %v1115 = vunpack.c.l.b16 %v1067
      %v1116 = vunpack.c.l.b16 %v1068
      %v1117 = vunpack.c.l.b16 %v1069
      %v1118 = vunpack.c.l.b16 %v1070
      %v1119 = vunpack.c.l.b16 %v1071
      %v1120 = vunpack.c.l.b16 %v1072
      %v1121 = vunpack.c.l.b16 %v1073
      %v1122 = vunpack.c.l.b16 %v1074
      %v1123 = vunpack.c.l.b16 %v1075
      %v1124 = vpack.c.b16 %v1109, %v1108
      %v1125 = vpack.c.b16 %v1111, %v1110
      %v1126 = vpack.c.b16 %v1113, %v1112
      %v1127 = vpack.c.b16 %v1115, %v1114
      %v1128 = vpack.c.b16 %v1117, %v1116
      %v1129 = vpack.c.b16 %v1119, %v1118
      %v1130 = vpack.c.b16 %v1121, %v1120
      %v1131 = vpack.c.b16 %v1123, %v1122
      %1140 = vmatprep.subr.bf16.mxu0 0
      %1141 = vmatpush1.bf16.msra.mxu0 %v1124
      %1142 = vmatprep.subr.bf16.mxu0 0
      %1143 = vmatpush1.bf16.msra.mxu0 %v1125
      %1144 = vmatprep.subr.bf16.mxu0 0
      %1145 = vmatpush1.bf16.msra.mxu0 %v1126
      %1146 = vmatprep.subr.bf16.mxu0 0
      %1147 = vmatpush1.bf16.msra.mxu0 %v1127
      %1148 = vmatprep.subr.bf16.mxu0 0
      %1149 = vmatpush1.bf16.msra.mxu0 %v1128
      %1150 = vmatprep.subr.bf16.mxu0 0
      %1151 = vmatpush1.bf16.msra.mxu0 %v1129
      %1152 = vmatprep.subr.bf16.mxu0 0
      %1153 = vmatpush1.bf16.msra.mxu0 %v1130
      %1154 = vmatprep.subr.bf16.mxu0 0
      %1155 = vmatpush1.bf16.msra.mxu0 %v1131
      %1156 = vmatprep.subr.bf16.mxu0 0
      %1157 = vmatpush1.bf16.msra.mxu0 0
      %1158 = vmatprep.subr.bf16.mxu0 0
      %1159 = vmatpush1.bf16.msra.mxu0 0
      %1160 = vmatprep.subr.bf16.mxu0 0
      %1161 = vmatpush1.bf16.msra.mxu0 0
      %1162 = vmatprep.subr.bf16.mxu0 0
      %1163 = vmatpush1.bf16.msra.mxu0 0
      %1164 = vmatprep.subr.bf16.mxu0 0
      %1165 = vmatpush1.bf16.msra.mxu0 0
      %1166 = vmatprep.subr.bf16.mxu0 0
      %1167 = vmatpush1.bf16.msra.mxu0 0
      %1168 = vmatprep.subr.bf16.mxu0 0
      %1169 = vmatpush1.bf16.msra.mxu0 0
      %1170 = vmatprep.subr.bf16.mxu0 0
      %1171 = vmatpush1.bf16.msra.mxu0 0
      %1172 = vmatprep.mubr.bf16.mxu0 0
      %1173 = vmatmul.mubr.bf16.gmra.mrb[0].mxu0 %v1084
      %v1174 = vpop.f32.mrb[0].mxu0
      %v1175 = vadd.f32 0.0, %v1174
      %v1176 = vpop.f32.mrb[0].mxu0
      %v1177 = vpop.f32.mrb[0].mxu0
      %v1178 = vadd.f32 0.0, %v1177
      %v1179 = vpop.f32.mrb[0].mxu0
      %1180 = vmatprep.mubr.bf16.mxu0 0
      %1181 = vmatmul.mubr.bf16.gmra.mrb[0].mxu0 %v1085
      %v1182 = vpop.f32.mrb[0].mxu0
      %v1183 = vadd.f32 0.0, %v1182
      %v1184 = vpop.f32.mrb[0].mxu0
      %v1185 = vpop.f32.mrb[0].mxu0
      %v1186 = vadd.f32 0.0, %v1185
      %v1187 = vpop.f32.mrb[0].mxu0
      %1188 = vmatprep.mubr.bf16.mxu0 0
      %1189 = vmatmul.mubr.bf16.gmra.mrb[0].mxu0 %v1086
      %v1190 = vpop.f32.mrb[0].mxu0
      %v1191 = vadd.f32 0.0, %v1190
      %v1192 = vpop.f32.mrb[0].mxu0
      %v1193 = vpop.f32.mrb[0].mxu0
      %v1194 = vadd.f32 0.0, %v1193
      %v1195 = vpop.f32.mrb[0].mxu0
      %1196 = vmatprep.mubr.bf16.mxu0 0
      %1197 = vmatmul.mubr.bf16.gmra.mrb[0].mxu0 %v1087
      %v1198 = vpop.f32.mrb[0].mxu0
      %v1199 = vadd.f32 0.0, %v1198
      %v1200 = vpop.f32.mrb[0].mxu0
      %v1201 = vpop.f32.mrb[0].mxu0
      %v1202 = vadd.f32 0.0, %v1201
      %v1203 = vpop.f32.mrb[0].mxu0
      %1204 = vdwg.mxu0
      %v1205 = vadd.f32 %v944, %v1175
      %v1206 = vadd.f32 %v945, %v1178
      %v1207 = vadd.f32 %v946, %v1183
      %v1208 = vadd.f32 %v947, %v1186
      %v1209 = vadd.f32 %v948, %v1191
      %v1210 = vadd.f32 %v949, %v1194
      %v1211 = vadd.f32 %v950, %v1199
      %v1212 = vadd.f32 %v951, %v1202
      %v1213 = vld [vmem:[%s782] sm:$0xe]
      %v1214 = vld [vmem:[%s782 + $0xc] sm:$0xe]
      %v1215 = vld [vmem:[%s782 + $0x18] sm:$0xe]
      %v1216 = vld [vmem:[%s782 + $0x24] sm:$0xe]
      %v1229 = vrot.slane %v1213, 5
      %v1230 = vrot.slane %v1229, 4
      %v1231 = vrot.slane %v953, 5
      %v1232 = vsel %vm597, %v1230, %v1231
      %v1233 = vrot.slane %v1231, 4
      %v1234 = vrot.slane %v954, 5
      %v1235 = vsel %vm597, %v1233, %v1234
      %v1236 = vrot.slane %v1214, 5
      %v1237 = vrot.slane %v1236, 4
      %v1238 = vrot.slane %v956, 5
      %v1239 = vsel %vm597, %v1237, %v1238
      %v1240 = vrot.slane %v1238, 4
      %v1241 = vrot.slane %v957, 5
      %v1242 = vsel %vm597, %v1240, %v1241
      %v1243 = vrot.slane %v1215, 5
      %v1244 = vrot.slane %v1243, 4
      %v1245 = vrot.slane %v959, 5
      %v1246 = vsel %vm597, %v1244, %v1245
      %v1247 = vrot.slane %v1245, 4
      %v1248 = vrot.slane %v960, 5
      %v1249 = vsel %vm597, %v1247, %v1248
      %v1250 = vrot.slane %v1216, 5
      %v1251 = vrot.slane %v1250, 4
      %v1252 = vrot.slane %v962, 5
      %v1253 = vsel %vm597, %v1251, %v1252
      %v1254 = vrot.slane %v1252, 4
      %v1255 = vrot.slane %v963, 5
      %v1256 = vsel %vm597, %v1254, %v1255
      %v1257 = vld [vmem:[%s1 + $0x140] sm:$0xf]
      %v1258 = vld [vmem:[%s1 + $0x144] sm:$0xf]
      %v1259 = vld [vmem:[%s1 + $0x148] sm:$0xf]
      %v1260 = vld [vmem:[%s1 + $0x14c] sm:$0xf]
      %v1261 = vld [vmem:[%s1 + $0x150] sm:$0xf]
      %v1262 = vld [vmem:[%s1 + $0x154] sm:$0xf]
      %v1263 = vld [vmem:[%s1 + $0x158] sm:$0xf]
      %v1264 = vld [vmem:[%s1 + $0x15c] sm:$0xf]
      %v1265 = vld [vmem:[%s1 + $0x160] sm:$0xf]
      %v1266 = vld [vmem:[%s1 + $0x164] sm:$0xf]
      %v1267 = vld [vmem:[%s1 + $0x168] sm:$0xf]
      %v1268 = vld [vmem:[%s1 + $0x16c] sm:$0xf]
      %v1269 = vld [vmem:[%s1 + $0x170] sm:$0xf]
      %v1270 = vld [vmem:[%s1 + $0x174] sm:$0xf]
      %v1271 = vld [vmem:[%s1 + $0x178] sm:$0xf]
      %v1272 = vld [vmem:[%s1 + $0x17c] sm:$0xf]
      %v1273 = vunpack.c.l.b16 %v1232
      %v1274 = vunpack.c.l.b16 %v1235
      %v1275 = vunpack.c.l.b16 %v1239
      %v1276 = vunpack.c.l.b16 %v1242
      %v1277 = vunpack.c.l.b16 %v1246
      %v1278 = vunpack.c.l.b16 %v1249
      %v1279 = vunpack.c.l.b16 %v1253
      %v1280 = vunpack.c.l.b16 %v1256
      %v1281 = vpack.c.b16 %v1274, %v1273
      %v1282 = vpack.c.b16 %v1276, %v1275
      %v1283 = vpack.c.b16 %v1278, %v1277
      %v1284 = vpack.c.b16 %v1280, %v1279
      %v1305 = vunpack.c.l.b16 %v1257
      %v1306 = vunpack.c.l.b16 %v1258
      %v1307 = vunpack.c.l.b16 %v1259
      %v1308 = vunpack.c.l.b16 %v1260
      %v1309 = vunpack.c.l.b16 %v1261
      %v1310 = vunpack.c.l.b16 %v1262
      %v1311 = vunpack.c.l.b16 %v1263
      %v1312 = vunpack.c.l.b16 %v1264
      %v1313 = vunpack.c.l.b16 %v1265
      %v1314 = vunpack.c.l.b16 %v1266
      %v1315 = vunpack.c.l.b16 %v1267
      %v1316 = vunpack.c.l.b16 %v1268
      %v1317 = vunpack.c.l.b16 %v1269
      %v1318 = vunpack.c.l.b16 %v1270
      %v1319 = vunpack.c.l.b16 %v1271
      %v1320 = vunpack.c.l.b16 %v1272
      %v1321 = vpack.c.b16 %v1306, %v1305
      %v1322 = vpack.c.b16 %v1308, %v1307
      %v1323 = vpack.c.b16 %v1310, %v1309
      %v1324 = vpack.c.b16 %v1312, %v1311
      %v1325 = vpack.c.b16 %v1314, %v1313
      %v1326 = vpack.c.b16 %v1316, %v1315
      %v1327 = vpack.c.b16 %v1318, %v1317
      %v1328 = vpack.c.b16 %v1320, %v1319
      %1337 = vmatprep.subr.bf16.mxu0 0
      %1338 = vmatpush1.bf16.msra.mxu0 %v1321
      %1339 = vmatprep.subr.bf16.mxu0 0
      %1340 = vmatpush1.bf16.msra.mxu0 %v1322
      %1341 = vmatprep.subr.bf16.mxu0 0
      %1342 = vmatpush1.bf16.msra.mxu0 %v1323
      %1343 = vmatprep.subr.bf16.mxu0 0
      %1344 = vmatpush1.bf16.msra.mxu0 %v1324
      %1345 = vmatprep.subr.bf16.mxu0 0
      %1346 = vmatpush1.bf16.msra.mxu0 %v1325
      %1347 = vmatprep.subr.bf16.mxu0 0
      %1348 = vmatpush1.bf16.msra.mxu0 %v1326
      %1349 = vmatprep.subr.bf16.mxu0 0
      %1350 = vmatpush1.bf16.msra.mxu0 %v1327
      %1351 = vmatprep.subr.bf16.mxu0 0
      %1352 = vmatpush1.bf16.msra.mxu0 %v1328
      %1353 = vmatprep.subr.bf16.mxu0 0
      %1354 = vmatpush1.bf16.msra.mxu0 0
      %1355 = vmatprep.subr.bf16.mxu0 0
      %1356 = vmatpush1.bf16.msra.mxu0 0
      %1357 = vmatprep.subr.bf16.mxu0 0
      %1358 = vmatpush1.bf16.msra.mxu0 0
      %1359 = vmatprep.subr.bf16.mxu0 0
      %1360 = vmatpush1.bf16.msra.mxu0 0
      %1361 = vmatprep.subr.bf16.mxu0 0
      %1362 = vmatpush1.bf16.msra.mxu0 0
      %1363 = vmatprep.subr.bf16.mxu0 0
      %1364 = vmatpush1.bf16.msra.mxu0 0
      %1365 = vmatprep.subr.bf16.mxu0 0
      %1366 = vmatpush1.bf16.msra.mxu0 0
      %1367 = vmatprep.subr.bf16.mxu0 0
      %1368 = vmatpush1.bf16.msra.mxu0 0
      %1369 = vmatprep.mubr.bf16.mxu0 0
      %1370 = vmatmul.mubr.bf16.gmra.mrb[0].mxu0 %v1281
      %v1371 = vpop.f32.mrb[0].mxu0
      %v1372 = vadd.f32 0.0, %v1371
      %v1373 = vpop.f32.mrb[0].mxu0
      %v1374 = vpop.f32.mrb[0].mxu0
      %v1375 = vadd.f32 0.0, %v1374
      %v1376 = vpop.f32.mrb[0].mxu0
      %1377 = vmatprep.mubr.bf16.mxu0 0
      %1378 = vmatmul.mubr.bf16.gmra.mrb[0].mxu0 %v1282
      %v1379 = vpop.f32.mrb[0].mxu0
      %v1380 = vadd.f32 0.0, %v1379
      %v1381 = vpop.f32.mrb[0].mxu0
      %v1382 = vpop.f32.mrb[0].mxu0
      %v1383 = vadd.f32 0.0, %v1382
      %v1384 = vpop.f32.mrb[0].mxu0
      %1385 = vmatprep.mubr.bf16.mxu0 0
      %1386 = vmatmul.mubr.bf16.gmra.mrb[0].mxu0 %v1283
      %v1387 = vpop.f32.mrb[0].mxu0
      %v1388 = vadd.f32 0.0, %v1387
      %v1389 = vpop.f32.mrb[0].mxu0
      %v1390 = vpop.f32.mrb[0].mxu0
      %v1391 = vadd.f32 0.0, %v1390
      %v1392 = vpop.f32.mrb[0].mxu0
      %1393 = vmatprep.mubr.bf16.mxu0 0
      %1394 = vmatmul.mubr.bf16.gmra.mrb[0].mxu0 %v1284
      %v1395 = vpop.f32.mrb[0].mxu0
      %v1396 = vadd.f32 0.0, %v1395
      %v1397 = vpop.f32.mrb[0].mxu0
      %v1398 = vpop.f32.mrb[0].mxu0
      %v1399 = vadd.f32 0.0, %v1398
      %v1400 = vpop.f32.mrb[0].mxu0
      %1401 = vdwg.mxu0
      %v1402 = vadd.f32 %v1205, %v1372
      %v1403 = vadd.f32 %v1206, %v1375
      %v1404 = vadd.f32 %v1207, %v1380
      %v1405 = vadd.f32 %v1208, %v1383
      %v1406 = vadd.f32 %v1209, %v1388
      %v1407 = vadd.f32 %v1210, %v1391
      %v1408 = vadd.f32 %v1211, %v1396
      %v1409 = vadd.f32 %v1212, %v1399
      %s1410 = sadd.s32 %s170, 2
      %s1411 = smul.u32 %s1410, 3
      %s1412 = smul.addr %s1411, 4
      %s1413 = scalar_lea.vmem %s157, %s1412
      %v1414 = vld [vmem:[%s1413] sm:$0xf]
      %v1415 = vld [vmem:[%s1413 + $0x4] sm:$0xf]
      %v1416 = vld [vmem:[%s1413 + $0xc] sm:$0xf]
      %v1417 = vld [vmem:[%s1413 + $0x10] sm:$0xf]
      %v1418 = vld [vmem:[%s1413 + $0x18] sm:$0xf]
      %v1419 = vld [vmem:[%s1413 + $0x1c] sm:$0xf]
      %v1420 = vld [vmem:[%s1413 + $0x24] sm:$0xf]
      %v1421 = vld [vmem:[%s1413 + $0x28] sm:$0xf]
      %v1422 = vld [vmem:[%s1 + $0x180] sm:$0xf]
      %v1423 = vld [vmem:[%s1 + $0x184] sm:$0xf]
      %v1424 = vld [vmem:[%s1 + $0x188] sm:$0xf]
      %v1425 = vld [vmem:[%s1 + $0x18c] sm:$0xf]
      %v1426 = vld [vmem:[%s1 + $0x190] sm:$0xf]
      %v1427 = vld [vmem:[%s1 + $0x194] sm:$0xf]
      %v1428 = vld [vmem:[%s1 + $0x198] sm:$0xf]
      %v1429 = vld [vmem:[%s1 + $0x19c] sm:$0xf]
      %v1430 = vld [vmem:[%s1 + $0x1a0] sm:$0xf]
      %v1431 = vld [vmem:[%s1 + $0x1a4] sm:$0xf]
      %v1432 = vld [vmem:[%s1 + $0x1a8] sm:$0xf]
      %v1433 = vld [vmem:[%s1 + $0x1ac] sm:$0xf]
      %v1434 = vld [vmem:[%s1 + $0x1b0] sm:$0xf]
      %v1435 = vld [vmem:[%s1 + $0x1b4] sm:$0xf]
      %v1436 = vld [vmem:[%s1 + $0x1b8] sm:$0xf]
      %v1437 = vld [vmem:[%s1 + $0x1bc] sm:$0xf]
      %v1446 = vunpack.c.l.b16 %v1414
      %v1447 = vunpack.c.l.b16 %v1415
      %v1448 = vunpack.c.l.b16 %v1416
      %v1449 = vunpack.c.l.b16 %v1417
      %v1450 = vunpack.c.l.b16 %v1418
      %v1451 = vunpack.c.l.b16 %v1419
      %v1452 = vunpack.c.l.b16 %v1420
      %v1453 = vunpack.c.l.b16 %v1421
      %v1454 = vpack.c.b16 %v1447, %v1446
      %v1455 = vpack.c.b16 %v1449, %v1448
      %v1456 = vpack.c.b16 %v1451, %v1450
      %v1457 = vpack.c.b16 %v1453, %v1452
      %v1478 = vunpack.c.l.b16 %v1422
      %v1479 = vunpack.c.l.b16 %v1423
      %v1480 = vunpack.c.l.b16 %v1424
      %v1481 = vunpack.c.l.b16 %v1425
      %v1482 = vunpack.c.l.b16 %v1426
      %v1483 = vunpack.c.l.b16 %v1427
      %v1484 = vunpack.c.l.b16 %v1428
      %v1485 = vunpack.c.l.b16 %v1429
      %v1486 = vunpack.c.l.b16 %v1430
      %v1487 = vunpack.c.l.b16 %v1431
      %v1488 = vunpack.c.l.b16 %v1432
      %v1489 = vunpack.c.l.b16 %v1433
      %v1490 = vunpack.c.l.b16 %v1434
      %v1491 = vunpack.c.l.b16 %v1435
      %v1492 = vunpack.c.l.b16 %v1436
      %v1493 = vunpack.c.l.b16 %v1437
      %v1494 = vpack.c.b16 %v1479, %v1478
      %v1495 = vpack.c.b16 %v1481, %v1480
      %v1496 = vpack.c.b16 %v1483, %v1482
      %v1497 = vpack.c.b16 %v1485, %v1484
      %v1498 = vpack.c.b16 %v1487, %v1486
      %v1499 = vpack.c.b16 %v1489, %v1488
      %v1500 = vpack.c.b16 %v1491, %v1490
      %v1501 = vpack.c.b16 %v1493, %v1492
      %1510 = vmatprep.subr.bf16.mxu0 0
      %1511 = vmatpush1.bf16.msra.mxu0 %v1494
      %1512 = vmatprep.subr.bf16.mxu0 0
      %1513 = vmatpush1.bf16.msra.mxu0 %v1495
      %1514 = vmatprep.subr.bf16.mxu0 0
      %1515 = vmatpush1.bf16.msra.mxu0 %v1496
      %1516 = vmatprep.subr.bf16.mxu0 0
      %1517 = vmatpush1.bf16.msra.mxu0 %v1497
      %1518 = vmatprep.subr.bf16.mxu0 0
      %1519 = vmatpush1.bf16.msra.mxu0 %v1498
      %1520 = vmatprep.subr.bf16.mxu0 0
      %1521 = vmatpush1.bf16.msra.mxu0 %v1499
      %1522 = vmatprep.subr.bf16.mxu0 0
      %1523 = vmatpush1.bf16.msra.mxu0 %v1500
      %1524 = vmatprep.subr.bf16.mxu0 0
      %1525 = vmatpush1.bf16.msra.mxu0 %v1501
      %1526 = vmatprep.subr.bf16.mxu0 0
      %1527 = vmatpush1.bf16.msra.mxu0 0
      %1528 = vmatprep.subr.bf16.mxu0 0
      %1529 = vmatpush1.bf16.msra.mxu0 0
      %1530 = vmatprep.subr.bf16.mxu0 0
      %1531 = vmatpush1.bf16.msra.mxu0 0
      %1532 = vmatprep.subr.bf16.mxu0 0
      %1533 = vmatpush1.bf16.msra.mxu0 0
      %1534 = vmatprep.subr.bf16.mxu0 0
      %1535 = vmatpush1.bf16.msra.mxu0 0
      %1536 = vmatprep.subr.bf16.mxu0 0
      %1537 = vmatpush1.bf16.msra.mxu0 0
      %1538 = vmatprep.subr.bf16.mxu0 0
      %1539 = vmatpush1.bf16.msra.mxu0 0
      %1540 = vmatprep.subr.bf16.mxu0 0
      %1541 = vmatpush1.bf16.msra.mxu0 0
      %1542 = vmatprep.mubr.bf16.mxu0 0
      %1543 = vmatmul.mubr.bf16.gmra.mrb[0].mxu0 %v1454
      %v1544 = vpop.f32.mrb[0].mxu0
      %v1545 = vadd.f32 0.0, %v1544
      %v1546 = vpop.f32.mrb[0].mxu0
      %v1547 = vpop.f32.mrb[0].mxu0
      %v1548 = vadd.f32 0.0, %v1547
      %v1549 = vpop.f32.mrb[0].mxu0
      %1550 = vmatprep.mubr.bf16.mxu0 0
      %1551 = vmatmul.mubr.bf16.gmra.mrb[0].mxu0 %v1455
      %v1552 = vpop.f32.mrb[0].mxu0
      %v1553 = vadd.f32 0.0, %v1552
      %v1554 = vpop.f32.mrb[0].mxu0
      %v1555 = vpop.f32.mrb[0].mxu0
      %v1556 = vadd.f32 0.0, %v1555
      %v1557 = vpop.f32.mrb[0].mxu0
      %1558 = vmatprep.mubr.bf16.mxu0 0
      %1559 = vmatmul.mubr.bf16.gmra.mrb[0].mxu0 %v1456
      %v1560 = vpop.f32.mrb[0].mxu0
      %v1561 = vadd.f32 0.0, %v1560
      %v1562 = vpop.f32.mrb[0].mxu0
      %v1563 = vpop.f32.mrb[0].mxu0
      %v1564 = vadd.f32 0.0, %v1563
      %v1565 = vpop.f32.mrb[0].mxu0
      %1566 = vmatprep.mubr.bf16.mxu0 0
      %1567 = vmatmul.mubr.bf16.gmra.mrb[0].mxu0 %v1457
      %v1568 = vpop.f32.mrb[0].mxu0
      %v1569 = vadd.f32 0.0, %v1568
      %v1570 = vpop.f32.mrb[0].mxu0
      %v1571 = vpop.f32.mrb[0].mxu0
      %v1572 = vadd.f32 0.0, %v1571
      %v1573 = vpop.f32.mrb[0].mxu0
      %1574 = vdwg.mxu0
      %v1575 = vadd.f32 %v1402, %v1545
      %v1576 = vadd.f32 %v1403, %v1548
      %v1577 = vadd.f32 %v1404, %v1553
      %v1578 = vadd.f32 %v1405, %v1556
      %v1579 = vadd.f32 %v1406, %v1561
      %v1580 = vadd.f32 %v1407, %v1564
      %v1581 = vadd.f32 %v1408, %v1569
      %v1582 = vadd.f32 %v1409, %v1572
      %v1583 = vld [vmem:[%s1413] sm:$0xf]
      %v1584 = vld [vmem:[%s1413 + $0x4] sm:$0xf]
      %v1585 = vld [vmem:[%s1413 + $0x8] sm:$0x1]
      %v1586 = vld [vmem:[%s1413 + $0xc] sm:$0xf]
      %v1587 = vld [vmem:[%s1413 + $0x10] sm:$0xf]
      %v1588 = vld [vmem:[%s1413 + $0x14] sm:$0x1]
      %v1589 = vld [vmem:[%s1413 + $0x18] sm:$0xf]
      %v1590 = vld [vmem:[%s1413 + $0x1c] sm:$0xf]
      %v1591 = vld [vmem:[%s1413 + $0x20] sm:$0x1]
      %v1592 = vld [vmem:[%s1413 + $0x24] sm:$0xf]
      %v1593 = vld [vmem:[%s1413 + $0x28] sm:$0xf]
      %v1594 = vld [vmem:[%s1413 + $0x2c] sm:$0x1]
      %v1596 = vshrl.u32 %v1583, 16
      %v1598 = vrot.slane %v1596, 4
      %v1599 = vshll.u32 %v1583, 16
      %v1601 = vrot.slane %v1599, 5
      %v1602 = vor.u32 %v1598, %v1601
      %v1603 = vrot.slane %v1602, 4
      %v1605 = vshll.u32 %v1584, 16
      %v1607 = vrot.slane %v1605, 5
      %v1608 = vsel %vm204, %v1603, %v1607
      %v1609 = vshrl.u32 %v1584, 16
      %v1611 = vrot.slane %v1609, 4
      %v1612 = vor.u32 %v1611, %v1607
      %v1613 = vrot.slane %v1612, 4
      %v1615 = vshll.u32 %v1585, 16
      %v1617 = vrot.slane %v1615, 5
      %v1618 = vsel %vm204, %v1613, %v1617
      %v1620 = vshrl.u32 %v1586, 16
      %v1622 = vrot.slane %v1620, 4
      %v1623 = vshll.u32 %v1586, 16
      %v1625 = vrot.slane %v1623, 5
      %v1626 = vor.u32 %v1622, %v1625
      %v1627 = vrot.slane %v1626, 4
      %v1629 = vshll.u32 %v1587, 16
      %v1631 = vrot.slane %v1629, 5
      %v1632 = vsel %vm204, %v1627, %v1631
      %v1633 = vshrl.u32 %v1587, 16
      %v1635 = vrot.slane %v1633, 4
      %v1636 = vor.u32 %v1635, %v1631
      %v1637 = vrot.slane %v1636, 4
      %v1639 = vshll.u32 %v1588, 16
      %v1641 = vrot.slane %v1639, 5
      %v1642 = vsel %vm204, %v1637, %v1641
      %v1644 = vshrl.u32 %v1589, 16
      %v1646 = vrot.slane %v1644, 4
      %v1647 = vshll.u32 %v1589, 16
      %v1649 = vrot.slane %v1647, 5
      %v1650 = vor.u32 %v1646, %v1649
      %v1651 = vrot.slane %v1650, 4
      %v1653 = vshll.u32 %v1590, 16
      %v1655 = vrot.slane %v1653, 5
      %v1656 = vsel %vm204, %v1651, %v1655
      %v1657 = vshrl.u32 %v1590, 16
      %v1659 = vrot.slane %v1657, 4
      %v1660 = vor.u32 %v1659, %v1655
      %v1661 = vrot.slane %v1660, 4
      %v1663 = vshll.u32 %v1591, 16
      %v1665 = vrot.slane %v1663, 5
      %v1666 = vsel %vm204, %v1661, %v1665
      %v1668 = vshrl.u32 %v1592, 16
      %v1670 = vrot.slane %v1668, 4
      %v1671 = vshll.u32 %v1592, 16
      %v1673 = vrot.slane %v1671, 5
      %v1674 = vor.u32 %v1670, %v1673
      %v1675 = vrot.slane %v1674, 4
      %v1677 = vshll.u32 %v1593, 16
      %v1679 = vrot.slane %v1677, 5
      %v1680 = vsel %vm204, %v1675, %v1679
      %v1681 = vshrl.u32 %v1593, 16
      %v1683 = vrot.slane %v1681, 4
      %v1684 = vor.u32 %v1683, %v1679
      %v1685 = vrot.slane %v1684, 4
      %v1687 = vshll.u32 %v1594, 16
      %v1689 = vrot.slane %v1687, 5
      %v1690 = vsel %vm204, %v1685, %v1689
      %v1691 = vld [vmem:[%s1 + $0x1c0] sm:$0xf]
      %v1692 = vld [vmem:[%s1 + $0x1c4] sm:$0xf]
      %v1693 = vld [vmem:[%s1 + $0x1c8] sm:$0xf]
      %v1694 = vld [vmem:[%s1 + $0x1cc] sm:$0xf]
      %v1695 = vld [vmem:[%s1 + $0x1d0] sm:$0xf]
      %v1696 = vld [vmem:[%s1 + $0x1d4] sm:$0xf]
      %v1697 = vld [vmem:[%s1 + $0x1d8] sm:$0xf]
      %v1698 = vld [vmem:[%s1 + $0x1dc] sm:$0xf]
      %v1699 = vld [vmem:[%s1 + $0x1e0] sm:$0xf]
      %v1700 = vld [vmem:[%s1 + $0x1e4] sm:$0xf]
      %v1701 = vld [vmem:[%s1 + $0x1e8] sm:$0xf]
      %v1702 = vld [vmem:[%s1 + $0x1ec] sm:$0xf]
      %v1703 = vld [vmem:[%s1 + $0x1f0] sm:$0xf]
      %v1704 = vld [vmem:[%s1 + $0x1f4] sm:$0xf]
      %v1705 = vld [vmem:[%s1 + $0x1f8] sm:$0xf]
      %v1706 = vld [vmem:[%s1 + $0x1fc] sm:$0xf]
      %v1707 = vunpack.c.l.b16 %v1608
      %v1708 = vunpack.c.l.b16 %v1618
      %v1709 = vunpack.c.l.b16 %v1632
      %v1710 = vunpack.c.l.b16 %v1642
      %v1711 = vunpack.c.l.b16 %v1656
      %v1712 = vunpack.c.l.b16 %v1666
      %v1713 = vunpack.c.l.b16 %v1680
      %v1714 = vunpack.c.l.b16 %v1690
      %v1715 = vpack.c.b16 %v1708, %v1707
      %v1716 = vpack.c.b16 %v1710, %v1709
      %v1717 = vpack.c.b16 %v1712, %v1711
      %v1718 = vpack.c.b16 %v1714, %v1713
      %v1739 = vunpack.c.l.b16 %v1691
      %v1740 = vunpack.c.l.b16 %v1692
      %v1741 = vunpack.c.l.b16 %v1693
      %v1742 = vunpack.c.l.b16 %v1694
      %v1743 = vunpack.c.l.b16 %v1695
      %v1744 = vunpack.c.l.b16 %v1696
      %v1745 = vunpack.c.l.b16 %v1697
      %v1746 = vunpack.c.l.b16 %v1698
      %v1747 = vunpack.c.l.b16 %v1699
      %v1748 = vunpack.c.l.b16 %v1700
      %v1749 = vunpack.c.l.b16 %v1701
      %v1750 = vunpack.c.l.b16 %v1702
      %v1751 = vunpack.c.l.b16 %v1703
      %v1752 = vunpack.c.l.b16 %v1704
      %v1753 = vunpack.c.l.b16 %v1705
      %v1754 = vunpack.c.l.b16 %v1706
      %v1755 = vpack.c.b16 %v1740, %v1739
      %v1756 = vpack.c.b16 %v1742, %v1741
      %v1757 = vpack.c.b16 %v1744, %v1743
      %v1758 = vpack.c.b16 %v1746, %v1745
      %v1759 = vpack.c.b16 %v1748, %v1747
      %v1760 = vpack.c.b16 %v1750, %v1749
      %v1761 = vpack.c.b16 %v1752, %v1751
      %v1762 = vpack.c.b16 %v1754, %v1753
      %1771 = vmatprep.subr.bf16.mxu0 0
      %1772 = vmatpush1.bf16.msra.mxu0 %v1755
      %1773 = vmatprep.subr.bf16.mxu0 0
      %1774 = vmatpush1.bf16.msra.mxu0 %v1756
      %1775 = vmatprep.subr.bf16.mxu0 0
      %1776 = vmatpush1.bf16.msra.mxu0 %v1757
      %1777 = vmatprep.subr.bf16.mxu0 0
      %1778 = vmatpush1.bf16.msra.mxu0 %v1758
      %1779 = vmatprep.subr.bf16.mxu0 0
      %1780 = vmatpush1.bf16.msra.mxu0 %v1759
      %1781 = vmatprep.subr.bf16.mxu0 0
      %1782 = vmatpush1.bf16.msra.mxu0 %v1760
      %1783 = vmatprep.subr.bf16.mxu0 0
      %1784 = vmatpush1.bf16.msra.mxu0 %v1761
      %1785 = vmatprep.subr.bf16.mxu0 0
      %1786 = vmatpush1.bf16.msra.mxu0 %v1762
      %1787 = vmatprep.subr.bf16.mxu0 0
      %1788 = vmatpush1.bf16.msra.mxu0 0
      %1789 = vmatprep.subr.bf16.mxu0 0
      %1790 = vmatpush1.bf16.msra.mxu0 0
      %1791 = vmatprep.subr.bf16.mxu0 0
      %1792 = vmatpush1.bf16.msra.mxu0 0
      %1793 = vmatprep.subr.bf16.mxu0 0
      %1794 = vmatpush1.bf16.msra.mxu0 0
      %1795 = vmatprep.subr.bf16.mxu0 0
      %1796 = vmatpush1.bf16.msra.mxu0 0
      %1797 = vmatprep.subr.bf16.mxu0 0
      %1798 = vmatpush1.bf16.msra.mxu0 0
      %1799 = vmatprep.subr.bf16.mxu0 0
      %1800 = vmatpush1.bf16.msra.mxu0 0
      %1801 = vmatprep.subr.bf16.mxu0 0
      %1802 = vmatpush1.bf16.msra.mxu0 0
      %1803 = vmatprep.mubr.bf16.mxu0 0
      %1804 = vmatmul.mubr.bf16.gmra.mrb[0].mxu0 %v1715
      %v1805 = vpop.f32.mrb[0].mxu0
      %v1806 = vadd.f32 0.0, %v1805
      %v1807 = vpop.f32.mrb[0].mxu0
      %v1808 = vpop.f32.mrb[0].mxu0
      %v1809 = vadd.f32 0.0, %v1808
      %v1810 = vpop.f32.mrb[0].mxu0
      %1811 = vmatprep.mubr.bf16.mxu0 0
      %1812 = vmatmul.mubr.bf16.gmra.mrb[0].mxu0 %v1716
      %v1813 = vpop.f32.mrb[0].mxu0
      %v1814 = vadd.f32 0.0, %v1813
      %v1815 = vpop.f32.mrb[0].mxu0
      %v1816 = vpop.f32.mrb[0].mxu0
      %v1817 = vadd.f32 0.0, %v1816
      %v1818 = vpop.f32.mrb[0].mxu0
      %1819 = vmatprep.mubr.bf16.mxu0 0
      %1820 = vmatmul.mubr.bf16.gmra.mrb[0].mxu0 %v1717
      %v1821 = vpop.f32.mrb[0].mxu0
      %v1822 = vadd.f32 0.0, %v1821
      %v1823 = vpop.f32.mrb[0].mxu0
      %v1824 = vpop.f32.mrb[0].mxu0
      %v1825 = vadd.f32 0.0, %v1824
      %v1826 = vpop.f32.mrb[0].mxu0
      %1827 = vmatprep.mubr.bf16.mxu0 0
      %1828 = vmatmul.mubr.bf16.gmra.mrb[0].mxu0 %v1718
      %v1829 = vpop.f32.mrb[0].mxu0
      %v1830 = vadd.f32 0.0, %v1829
      %v1831 = vpop.f32.mrb[0].mxu0
      %v1832 = vpop.f32.mrb[0].mxu0
      %v1833 = vadd.f32 0.0, %v1832
      %v1834 = vpop.f32.mrb[0].mxu0
      %1835 = vdwg.mxu0
      %v1836 = vadd.f32 %v1575, %v1806
      %v1837 = vadd.f32 %v1576, %v1809
      %v1838 = vadd.f32 %v1577, %v1814
      %v1839 = vadd.f32 %v1578, %v1817
      %v1840 = vadd.f32 %v1579, %v1822
      %v1841 = vadd.f32 %v1580, %v1825
      %v1842 = vadd.f32 %v1581, %v1830
      %v1843 = vadd.f32 %v1582, %v1833
      %v1844 = vld [vmem:[%s1413] sm:$0xe]
      %v1845 = vld [vmem:[%s1413 + $0xc] sm:$0xe]
      %v1846 = vld [vmem:[%s1413 + $0x18] sm:$0xe]
      %v1847 = vld [vmem:[%s1413 + $0x24] sm:$0xe]
      %v1860 = vrot.slane %v1844, 5
      %v1861 = vrot.slane %v1860, 4
      %v1862 = vrot.slane %v1584, 5
      %v1863 = vsel %vm597, %v1861, %v1862
      %v1864 = vrot.slane %v1862, 4
      %v1865 = vrot.slane %v1585, 5
      %v1866 = vsel %vm597, %v1864, %v1865
      %v1867 = vrot.slane %v1845, 5
      %v1868 = vrot.slane %v1867, 4
      %v1869 = vrot.slane %v1587, 5
      %v1870 = vsel %vm597, %v1868, %v1869
      %v1871 = vrot.slane %v1869, 4
      %v1872 = vrot.slane %v1588, 5
      %v1873 = vsel %vm597, %v1871, %v1872
      %v1874 = vrot.slane %v1846, 5
      %v1875 = vrot.slane %v1874, 4
      %v1876 = vrot.slane %v1590, 5
      %v1877 = vsel %vm597, %v1875, %v1876
      %v1878 = vrot.slane %v1876, 4
      %v1879 = vrot.slane %v1591, 5
      %v1880 = vsel %vm597, %v1878, %v1879
      %v1881 = vrot.slane %v1847, 5
      %v1882 = vrot.slane %v1881, 4
      %v1883 = vrot.slane %v1593, 5
      %v1884 = vsel %vm597, %v1882, %v1883
      %v1885 = vrot.slane %v1883, 4
      %v1886 = vrot.slane %v1594, 5
      %v1887 = vsel %vm597, %v1885, %v1886
      %v1888 = vld [vmem:[%s1 + $0x200] sm:$0xf]
      %v1889 = vld [vmem:[%s1 + $0x204] sm:$0xf]
      %v1890 = vld [vmem:[%s1 + $0x208] sm:$0xf]
      %v1891 = vld [vmem:[%s1 + $0x20c] sm:$0xf]
      %v1892 = vld [vmem:[%s1 + $0x210] sm:$0xf]
      %v1893 = vld [vmem:[%s1 + $0x214] sm:$0xf]
      %v1894 = vld [vmem:[%s1 + $0x218] sm:$0xf]
      %v1895 = vld [vmem:[%s1 + $0x21c] sm:$0xf]
      %v1896 = vld [vmem:[%s1 + $0x220] sm:$0xf]
      %v1897 = vld [vmem:[%s1 + $0x224] sm:$0xf]
      %v1898 = vld [vmem:[%s1 + $0x228] sm:$0xf]
      %v1899 = vld [vmem:[%s1 + $0x22c] sm:$0xf]
      %v1900 = vld [vmem:[%s1 + $0x230] sm:$0xf]
      %v1901 = vld [vmem:[%s1 + $0x234] sm:$0xf]
      %v1902 = vld [vmem:[%s1 + $0x238] sm:$0xf]
      %v1903 = vld [vmem:[%s1 + $0x23c] sm:$0xf]
      %v1904 = vunpack.c.l.b16 %v1863
      %v1905 = vunpack.c.l.b16 %v1866
      %v1906 = vunpack.c.l.b16 %v1870
      %v1907 = vunpack.c.l.b16 %v1873
      %v1908 = vunpack.c.l.b16 %v1877
      %v1909 = vunpack.c.l.b16 %v1880
      %v1910 = vunpack.c.l.b16 %v1884
      %v1911 = vunpack.c.l.b16 %v1887
      %v1912 = vpack.c.b16 %v1905, %v1904
      %v1913 = vpack.c.b16 %v1907, %v1906
      %v1914 = vpack.c.b16 %v1909, %v1908
      %v1915 = vpack.c.b16 %v1911, %v1910
      %v1936 = vunpack.c.l.b16 %v1888
      %v1937 = vunpack.c.l.b16 %v1889
      %v1938 = vunpack.c.l.b16 %v1890
      %v1939 = vunpack.c.l.b16 %v1891
      %v1940 = vunpack.c.l.b16 %v1892
      %v1941 = vunpack.c.l.b16 %v1893
      %v1942 = vunpack.c.l.b16 %v1894
      %v1943 = vunpack.c.l.b16 %v1895
      %v1944 = vunpack.c.l.b16 %v1896
      %v1945 = vunpack.c.l.b16 %v1897
      %v1946 = vunpack.c.l.b16 %v1898
      %v1947 = vunpack.c.l.b16 %v1899
      %v1948 = vunpack.c.l.b16 %v1900
      %v1949 = vunpack.c.l.b16 %v1901
      %v1950 = vunpack.c.l.b16 %v1902
      %v1951 = vunpack.c.l.b16 %v1903
      %v1952 = vpack.c.b16 %v1937, %v1936
      %v1953 = vpack.c.b16 %v1939, %v1938
      %v1954 = vpack.c.b16 %v1941, %v1940
      %v1955 = vpack.c.b16 %v1943, %v1942
      %v1956 = vpack.c.b16 %v1945, %v1944
      %v1957 = vpack.c.b16 %v1947, %v1946
      %v1958 = vpack.c.b16 %v1949, %v1948
      %v1959 = vpack.c.b16 %v1951, %v1950
      %1968 = vmatprep.subr.bf16.mxu0 0
      %1969 = vmatpush1.bf16.msra.mxu0 %v1952
      %1970 = vmatprep.subr.bf16.mxu0 0
      %1971 = vmatpush1.bf16.msra.mxu0 %v1953
      %1972 = vmatprep.subr.bf16.mxu0 0
      %1973 = vmatpush1.bf16.msra.mxu0 %v1954
      %1974 = vmatprep.subr.bf16.mxu0 0
      %1975 = vmatpush1.bf16.msra.mxu0 %v1955
      %1976 = vmatprep.subr.bf16.mxu0 0
      %1977 = vmatpush1.bf16.msra.mxu0 %v1956
      %1978 = vmatprep.subr.bf16.mxu0 0
      %1979 = vmatpush1.bf16.msra.mxu0 %v1957
      %1980 = vmatprep.subr.bf16.mxu0 0
      %1981 = vmatpush1.bf16.msra.mxu0 %v1958
      %1982 = vmatprep.subr.bf16.mxu0 0
      %1983 = vmatpush1.bf16.msra.mxu0 %v1959
      %1984 = vmatprep.subr.bf16.mxu0 0
      %1985 = vmatpush1.bf16.msra.mxu0 0
      %1986 = vmatprep.subr.bf16.mxu0 0
      %1987 = vmatpush1.bf16.msra.mxu0 0
      %1988 = vmatprep.subr.bf16.mxu0 0
      %1989 = vmatpush1.bf16.msra.mxu0 0
      %1990 = vmatprep.subr.bf16.mxu0 0
      %1991 = vmatpush1.bf16.msra.mxu0 0
      %1992 = vmatprep.subr.bf16.mxu0 0
      %1993 = vmatpush1.bf16.msra.mxu0 0
      %1994 = vmatprep.subr.bf16.mxu0 0
      %1995 = vmatpush1.bf16.msra.mxu0 0
      %1996 = vmatprep.subr.bf16.mxu0 0
      %1997 = vmatpush1.bf16.msra.mxu0 0
      %1998 = vmatprep.subr.bf16.mxu0 0
      %1999 = vmatpush1.bf16.msra.mxu0 0
      %2000 = vmatprep.mubr.bf16.mxu0 0
      %2001 = vmatmul.mubr.bf16.gmra.mrb[0].mxu0 %v1912
      %v2002 = vpop.f32.mrb[0].mxu0
      %v2003 = vadd.f32 0.0, %v2002
      %v2004 = vpop.f32.mrb[0].mxu0
      %v2005 = vpop.f32.mrb[0].mxu0
      %v2006 = vadd.f32 0.0, %v2005
      %v2007 = vpop.f32.mrb[0].mxu0
      %2008 = vmatprep.mubr.bf16.mxu0 0
      %2009 = vmatmul.mubr.bf16.gmra.mrb[0].mxu0 %v1913
      %v2010 = vpop.f32.mrb[0].mxu0
      %v2011 = vadd.f32 0.0, %v2010
      %v2012 = vpop.f32.mrb[0].mxu0
      %v2013 = vpop.f32.mrb[0].mxu0
      %v2014 = vadd.f32 0.0, %v2013
      %v2015 = vpop.f32.mrb[0].mxu0
      %2016 = vmatprep.mubr.bf16.mxu0 0
      %2017 = vmatmul.mubr.bf16.gmra.mrb[0].mxu0 %v1914
      %v2018 = vpop.f32.mrb[0].mxu0
      %v2019 = vadd.f32 0.0, %v2018
      %v2020 = vpop.f32.mrb[0].mxu0
      %v2021 = vpop.f32.mrb[0].mxu0
      %v2022 = vadd.f32 0.0, %v2021
      %v2023 = vpop.f32.mrb[0].mxu0
      %2024 = vmatprep.mubr.bf16.mxu0 0
      %2025 = vmatmul.mubr.bf16.gmra.mrb[0].mxu0 %v1915
      %v2026 = vpop.f32.mrb[0].mxu0
      %v2027 = vadd.f32 0.0, %v2026
      %v2028 = vpop.f32.mrb[0].mxu0
      %v2029 = vpop.f32.mrb[0].mxu0
      %v2030 = vadd.f32 0.0, %v2029
      %v2031 = vpop.f32.mrb[0].mxu0
      %2032 = vdwg.mxu0
      %v2033 = vadd.f32 %v1836, %v2003
      %v2034 = vadd.f32 %v1837, %v2006
      %v2035 = vadd.f32 %v1838, %v2011
      %v2036 = vadd.f32 %v1839, %v2014
      %v2037 = vadd.f32 %v1840, %v2019
      %v2038 = vadd.f32 %v1841, %v2022
      %v2039 = vadd.f32 %v1842, %v2027
      %v2040 = vadd.f32 %v1843, %v2030
      %2041 = vst [vmem:[%s167] sm:$0xff] %v2033
      %2042 = vst [vmem:[%s167 + $0x8] sm:$0xff] %v2034
      %2043 = vst [vmem:[%s167 + $0x10] sm:$0xff] %v2035
      %2044 = vst [vmem:[%s167 + $0x18] sm:$0xff] %v2036
      %2045 = vst [vmem:[%s167 + $0x20] sm:$0xff] %v2037
      %2046 = vst [vmem:[%s167 + $0x28] sm:$0xff] %v2038
      %2047 = vst [vmem:[%s167 + $0x30] sm:$0xff] %v2039
      %2048 = vst [vmem:[%s167 + $0x38] sm:$0xff] %v2040
      %s2049 = smul.u32 4, %s18
      %p2050 = scmp.lt.s32.totalorder %s17, 1
      %s2051 = scalar_select %p2050, %s17, 1
      %p2052 = scmp.lt.s32.totalorder %s2049, 7
      %s2053 = scalar_select %p2052, %s2049, 7
      %s2054 = smul.addr %s2053, 2
      %s2055 = smul.addr %s2051, 16
      %s2056 = sadd.s32 %s2054, %s2055
      %s2057 = smul.addr %s2056, 8
      %s2058 = scalar_lea.vmem %s2, %s2057
      // Predicated region
      $region29: #{basic_conv3d_forward.1} parent=27 // pred_check
        %p2059 = pneg %p92
      $region30: #{basic_conv3d_forward.1} parent=27 // pred_check_branch
        %2061 = sbr.rel (%p2059) target = $region32
      $region31: #{basic_conv3d_forward.1} parent=27 // pred_region
        %s2062 = smul.u32 4, %s18
      $region32: #{basic_conv3d_forward.1} parent=27 // pred_fallthru
        _
    $region28: #{basic_conv3d_forward.1} parent=5 // pred_fallthru
      _
    %p2063 = scmp.le.s32.totalorder 2, %s8
    // Predicated region
    $region33: #{basic_conv3d_forward.1} parent=5 // pred_check
      %p2064 = pneg %p2063
    $region34: #{basic_conv3d_forward.1} parent=5 // pred_check_branch
      %2066 = sbr.rel (%p2064) target = $region36
    $region35: #{basic_conv3d_forward.1} parent=5 // pred_region
      %s2067 = ssub.s32 %s8, 2
      // Predicated region
      $region37: #{basic_conv3d_forward.1} parent=35 // pred_check
        %p2068 = pneg %p98
      $region38: #{basic_conv3d_forward.1} parent=35 // pred_check_branch
        %2070 = sbr.rel (%p2068) target = $region40
      $region39: #{basic_conv3d_forward.1} parent=35 // pred_region
        %s2071 = smul.u32 4, %s20
        %p2072 = scmp.lt.s32.totalorder %s19, 1
        %s2073 = scalar_select %p2072, %s19, 1
        %p2074 = scmp.lt.s32.totalorder %s2071, 7
        %s2075 = scalar_select %p2074, %s2071, 7
        %s2076 = smul.addr %s2075, 2
        %s2077 = smul.addr %s2073, 16
        %s2078 = sadd.s32 %s2076, %s2077
        %s2079 = smul.addr %s2078, 8
        %s2080 = scalar_lea.vmem %s2, %s2079
      $region40: #{basic_conv3d_forward.1} parent=35 // pred_fallthru
        _
    $region36: #{basic_conv3d_forward.1} parent=5 // pred_fallthru
      _
  $region6: #{basic_conv3d_forward.1} parent=0 // loop_footer
    %s12 = sadd.s32 1, %s8
  $region7: #{basic_conv3d_forward.1} parent=0 // loop_footer_branch
    %7 = sbr.rel target = $region3
  $region8: #{basic_conv3d_forward.1} parent=0 // loop_exit
    _

</llo_original>
